<compile_context>
chip_gen: v6e
topology: v6e:2x2x1
jax: 0.10.0
libtpu: 0.0.40
codegen_flags: <defaults>
</compile_context>

<pallas_src>
import functools

import jax
import jax.numpy as jnp
from jax.experimental import pallas as pl
from jax.experimental.pallas import tpu as pltpu


_VMEM_LIMIT = 48 * 1024 * 1024  # safe scoped-VMEM budget on v5e / v6e / v7x


# ---------------------------------------------------------------------------
# Kernel 1: fused RMSNorm + grouped QKV + RoPE + QK-norm + causal attention
#           + o-proj + residual.  One grid step per KV head group.
# ---------------------------------------------------------------------------
def _attn_group_kernel(x_ref, lnw_ref, cos_ref, sin_ref, wqkv_ref, wo_ref,
                       out_ref, xn_sc, acc_sc, *, eps, qk_eps, scaling,
                       use_qk_norm, group_size, head_dim):
    n = pl.program_id(0)
    G = group_size
    F = head_dim // 2

    # Input RMSNorm computed once (step 0) into a bf16 scratch; the f32
    # accumulator is seeded with the residual at the same time.
    @pl.when(n == 0)
    def _init():
        x = x_ref[...].astype(jnp.float32)
        var = jnp.mean(x * x, axis=-1, keepdims=True)
        xn = x * jax.lax.rsqrt(var + eps) * lnw_ref[...]
        xn_sc[...] = xn.astype(xn_sc.dtype)
        acc_sc[...] = x                                       # residual

    xn = xn_sc[...]                                           # (T, H) bf16
    # One MXU matmul for this KV group: [q_head0 .. q_head{G-1} | k | v],
    # each head laid out [x-pair comps | y-pair comps] (de-interleave folded
    # into the weights at init).
    qkv = jnp.dot(xn, wqkv_ref[0],
                  preferred_element_type=jnp.float32)         # (T, (G+2)*HD)

    cos = cos_ref[...]                                        # (T, F) f32
    sin = sin_ref[...]

    k_off = G * head_dim
    v_off = (G + 1) * head_dim
    kx = qkv[:, k_off:k_off + F]
    ky = qkv[:, k_off + F:v_off]
    v = qkv[:, v_off:]

    kxr = kx * cos - ky * sin
    kyr = kx * sin + ky * cos
    if use_qk_norm:
        k_ms = (jnp.sum(kxr * kxr, axis=-1, keepdims=True) +
                jnp.sum(kyr * kyr, axis=-1, keepdims=True)) / head_dim
        k_inv = jax.lax.rsqrt(k_ms + qk_eps)
        kxr = kxr * k_inv
        kyr = kyr * k_inv
    kxb = kxr.astype(jnp.bfloat16)
    kyb = kyr.astype(jnp.bfloat16)
    vb = v.astype(jnp.bfloat16)

    t = xn.shape[0]
    rows = jax.lax.broadcasted_iota(jnp.int32, (t, t), 0)
    cols = jax.lax.broadcasted_iota(jnp.int32, (t, t), 1)
    mask_bias = jnp.where(rows >= cols, jnp.float32(0.0), jnp.float32(-1e30))

    dn = (((1,), (1,)), ((), ()))
    ctx_parts = []
    for g in range(G):
        off = g * head_dim
        qx = qkv[:, off:off + F]
        qy = qkv[:, off + F:off + head_dim]
        qxr = qx * cos - qy * sin
        qyr = qx * sin + qy * cos
        if use_qk_norm:
            q_ms = (jnp.sum(qxr * qxr, axis=-1, keepdims=True) +
                    jnp.sum(qyr * qyr, axis=-1, keepdims=True)) / head_dim
            q_inv = jax.lax.rsqrt(q_ms + qk_eps)
            qxr = qxr * q_inv
            qyr = qyr * q_inv
        # Fold the attention scaling into q (T*HD mults instead of T*T).
        qxb = (qxr * scaling).astype(jnp.bfloat16)
        qyb = (qyr * scaling).astype(jnp.bfloat16)
        # scores[t, s] = q[t] . k[s]; the per-head pair permutation cancels.
        scores = (jax.lax.dot_general(qxb, kxb, dn,
                                      preferred_element_type=jnp.float32) +
                  jax.lax.dot_general(qyb, kyb, dn,
                                      preferred_element_type=jnp.float32))
        scores = scores + mask_bias
        m = jnp.max(scores, axis=-1, keepdims=True)
        ex = jnp.exp(scores - m)
        l = jnp.sum(ex, axis=-1, keepdims=True)
        ctx = jnp.dot(ex.astype(jnp.bfloat16), vb,
                      preferred_element_type=jnp.float32)     # (T, HD)
        # Softmax denominator folded into the context (EUP reciprocal).
        ctx_parts.append(ctx * pl.reciprocal(l, approx=True))

    # Output projection for the whole group, accumulated with the residual.
    ctx_group = jnp.concatenate(ctx_parts, axis=-1).astype(jnp.bfloat16)
    acc_sc[...] += jnp.dot(ctx_group, wo_ref[0],
                           preferred_element_type=jnp.float32)

    @pl.when(n == pl.num_programs(0) - 1)
    def _store():
        out_ref[...] = acc_sc[...].astype(out_ref.dtype)


# ---------------------------------------------------------------------------
# Kernel 2: post-attention RMSNorm + router top-k + sigmoid gating.
# Outputs: (T, E+1) lane-dense score slab (col E = shared expert, gate 1.0),
#          (T, H) bf16 normed hidden (reused by the MoE kernel),
#          (1, E+1) int32 per-expert "any token routed here" flags.
# ---------------------------------------------------------------------------
def _router_kernel(h_ref, lnw_ref, wr_ref, scores_ref, xn_ref, act_ref, *,
                   eps, top_k):
    x = h_ref[...].astype(jnp.float32)
    var = jnp.mean(x * x, axis=-1, keepdims=True)
    xn = x * jax.lax.rsqrt(var + eps) * lnw_ref[...]
    xn_ref[...] = xn.astype(xn_ref.dtype)

    logits = jnp.dot(xn.astype(jnp.bfloat16), wr_ref[...],
                     preferred_element_type=jnp.float32)      # (T, E)
    t, ne = logits.shape
    col = jax.lax.broadcasted_iota(jnp.int32, (t, ne), 1)

    # Vectorized top-k (ties broken by lowest index, matching torch.topk):
    # top_k passes of max + first-occurrence selection.
    remaining = logits
    selected = jnp.zeros((t, ne), jnp.float32)
    for _ in range(top_k):
        m = jnp.max(remaining, axis=-1, keepdims=True)
        is_m = remaining == m
        cand = jnp.where(is_m, col, jnp.int32(ne))
        amin = jnp.min(cand, axis=-1, keepdims=True)
        first = col == amin
        selected = jnp.maximum(selected, first.astype(jnp.float32))
        remaining = jnp.where(first, jnp.float32(-1e30), remaining)

    gates = jnp.where(selected > 0, jax.nn.sigmoid(logits), jnp.float32(0.0))
    ones = jnp.ones((t, 1), jnp.float32)                      # shared expert
    all_scores = jnp.concatenate([gates, ones], axis=-1)      # (T, E+1)
    scores_ref[...] = all_scores
    act_ref[...] = (jnp.max(all_scores, axis=0, keepdims=True)
                    > 0.0).astype(jnp.int32)


# ---------------------------------------------------------------------------
# Kernel 3: MoE experts + shared expert + residual, tiled over the
# intermediate dimension; inactive experts are skipped via scalar-prefetch
# flags.  Dense-equivalent formulation of the reference gather/scatter_add
# (gate == 0 -> expert contributes exactly 0).
# ---------------------------------------------------------------------------
def _moe_ffn_kernel(act_ref, h_ref, xn_ref, scores_ref, wgu_ref, wdown_ref,
                    out_ref, acc_ref):
    e = pl.program_id(0)
    i = pl.program_id(1)

    @pl.when(jnp.logical_and(e == 0, i == 0))
    def _init():
        acc_ref[...] = h_ref[...].astype(jnp.float32)         # residual

    @pl.when(act_ref[e] > 0)
    def _compute():
        s = scores_ref[...]                                   # (T, E+1) f32
        col = jax.lax.broadcasted_iota(jnp.int32, s.shape, 1)
        gate_col = jnp.sum(jnp.where(col == e, s, jnp.float32(0.0)),
                           axis=-1, keepdims=True)            # (T, 1)
        xe = (xn_ref[...].astype(jnp.float32) * gate_col).astype(jnp.bfloat16)
        g = jnp.dot(xe, wgu_ref[0, 0],
                    preferred_element_type=jnp.float32)       # (T, TI)
        u = jnp.dot(xe, wgu_ref[0, 1],
                    preferred_element_type=jnp.float32)
        h_act = (g * jax.nn.sigmoid(g) * u).astype(jnp.bfloat16)
        acc_ref[...] += jnp.dot(h_act, wdown_ref[0],
                                preferred_element_type=jnp.float32)

    @pl.when(jnp.logical_and(e == pl.num_programs(0) - 1,
                             i == pl.num_programs(1) - 1))
    def _store():
        out_ref[...] = acc_ref[...].astype(out_ref.dtype)


# ---------------------------------------------------------------------------
# Module wrapper.
# ---------------------------------------------------------------------------
class Llama4TextDecoderLayerPallas:
    """JAX/Pallas forward-pass equivalent of Llama4TextDecoderLayer
    (MoE layer, RoPE-enabled, prefill / causal attention path)."""

    def __init__(self, params, *, num_heads, num_kv_heads, head_dim,
                 intermediate_size, num_experts, top_k, rms_norm_eps=1e-5,
                 qk_norm_eps=None, use_qk_norm=True, moe_block_i=None):
        self.num_heads = int(num_heads)
        self.num_kv_heads = int(num_kv_heads)
        self.head_dim = int(head_dim)
        self.intermediate_size = int(intermediate_size)
        self.num_experts = int(num_experts)
        self.top_k = int(top_k)
        self.eps = float(rms_norm_eps)
        self.qk_norm_eps = float(rms_norm_eps if qk_norm_eps is None
                                 else qk_norm_eps)
        self.use_qk_norm = bool(use_qk_norm)
        self.scaling = float(head_dim) ** -0.5

        assert self.num_heads % self.num_kv_heads == 0
        assert self.head_dim % 2 == 0
        G = self.num_heads // self.num_kv_heads
        HD = self.head_dim

        H = params["wq"].shape[0]
        self.hidden_size = H
        f32 = jnp.float32
        bf16 = jnp.bfloat16

        # RMSNorm weights as (1, H) lane-major rows (kept in f32).
        self.lnw_in = params["ln_in"].reshape(1, H).astype(f32)
        self.lnw_post = params["ln_post"].reshape(1, H).astype(f32)

        # Fold the RoPE interleaved-pair de-interleave into the projection
        # weights (per head: first HD/2 output cols = pair-x, last = pair-y).
        def deinterleave(w, n):
            w3 = w.astype(f32).reshape(H, n, HD)
            return jnp.concatenate([w3[:, :, 0::2], w3[:, :, 1::2]], axis=-1)

        wq_d = deinterleave(params["wq"], self.num_heads)       # (H, NH, HD)
        wk_d = deinterleave(params["wk"], self.num_kv_heads)    # (H, NKV, HD)
        wv3 = params["wv"].astype(f32).reshape(H, self.num_kv_heads, HD)

        # Merged per-KV-group weight: [Q heads of the group | K | V].
        group_blocks = []
        for n in range(self.num_kv_heads):
            q_grp = wq_d[:, n * G:(n + 1) * G, :].reshape(H, G * HD)
            group_blocks.append(
                jnp.concatenate([q_grp, wk_d[:, n, :], wv3[:, n, :]], axis=-1))
        self.wqkv = jnp.stack(group_blocks, axis=0).astype(bf16)  # (NKV,H,(G+2)HD)

        self.wo = params["wo"].astype(f32).reshape(
            self.num_kv_heads, G * HD, H).astype(bf16)           # (NKV,G*HD,H)

        self.wr = params["wr"].astype(bf16)                      # (H, E)

        # Routed experts + shared expert (pseudo-expert E, gate = 1).
        I = self.intermediate_size
        wgu = jnp.concatenate(
            [params["wgu"].astype(f32),
             params["wgu_shared"].astype(f32)[None]], axis=0)    # (E+1, H, 2I)
        self.wgu_all = jnp.stack([wgu[:, :, :I], wgu[:, :, I:]],
                                 axis=1).astype(bf16)            # (E+1,2,H,I)
        self.wdown_all = jnp.concatenate(
            [params["wdown"].astype(f32),
             params["wdown_shared"].astype(f32)[None]],
            axis=0).astype(bf16)                                 # (E+1, I, H)

        # Tile size for the intermediate dimension of the expert FFN.
        if moe_block_i is None:
            moe_block_i = I
            for cand in (512, 256, 128):
                if I % cand == 0 and I > cand:
                    moe_block_i = cand
                    break
        moe_block_i = int(moe_block_i)
        assert I % moe_block_i == 0
        assert moe_block_i == I or moe_block_i % 128 == 0
        self.moe_block_i = moe_block_i

        self._fwd = jax.jit(self._forward)

    # -- forward ------------------------------------------------------------
    def _forward(self, hidden_states, freqs_ci):
        T, H = hidden_states.shape
        NKV, HD = self.num_kv_heads, self.head_dim
        G = self.num_heads // NKV
        F = HD // 2
        E = self.num_experts
        TI = self.moe_block_i
        KI = self.intermediate_size // TI
        dtype = hidden_states.dtype

        cos = freqs_ci[..., 0].astype(jnp.float32).reshape(T, F)
        sin = freqs_ci[..., 1].astype(jnp.float32).reshape(T, F)

        # ---- 1. RMSNorm + grouped QKV + RoPE + attention + o-proj + residual
        # TODO(synk): flash-style q/kv sequence tiling for long T; the (T, T)
        # score tile is materialized per head here.
        h_attn = pl.pallas_call(
            functools.partial(
                _attn_group_kernel, eps=self.eps, qk_eps=self.qk_norm_eps,
                scaling=self.scaling, use_qk_norm=self.use_qk_norm,
                group_size=G, head_dim=HD),
            grid=(NKV,),
            in_specs=[
                pl.BlockSpec((T, H), lambda n: (0, 0)),
                pl.BlockSpec((1, H), lambda n: (0, 0)),
                pl.BlockSpec((T, F), lambda n: (0, 0)),
                pl.BlockSpec((T, F), lambda n: (0, 0)),
                pl.BlockSpec((1, H, (G + 2) * HD), lambda n: (n, 0, 0)),
                pl.BlockSpec((1, G * HD, H), lambda n: (n, 0, 0)),
            ],
            out_specs=pl.BlockSpec((T, H), lambda n: (0, 0)),
            out_shape=jax.ShapeDtypeStruct((T, H), dtype),
            scratch_shapes=[pltpu.VMEM((T, H), jnp.bfloat16),
                            pltpu.VMEM((T, H), jnp.float32)],
            compiler_params=pltpu.CompilerParams(
                dimension_semantics=("arbitrary",),
                vmem_limit_bytes=_VMEM_LIMIT),
        )(hidden_states, self.lnw_in, cos, sin, self.wqkv, self.wo)

        # ---- 2. post-attention RMSNorm + router top-k + sigmoid gates ------
        scores, xn_post, active = pl.pallas_call(
            functools.partial(_router_kernel, eps=self.eps, top_k=self.top_k),
            out_shape=(jax.ShapeDtypeStruct((T, E + 1), jnp.float32),
                       jax.ShapeDtypeStruct((T, H), jnp.bfloat16),
                       jax.ShapeDtypeStruct((1, E + 1), jnp.int32)),
        )(h_attn, self.lnw_post, self.wr)
        active = active.reshape(E + 1)   # routing metadata for expert skip

        # ---- 3. MoE experts + shared expert + residual (I-tiled, skipped
        #         for experts with no routed tokens) -------------------------
        out = pl.pallas_call(
            _moe_ffn_kernel,
            grid_spec=pltpu.PrefetchScalarGridSpec(
                num_scalar_prefetch=1,
                grid=(E + 1, KI),
                in_specs=[
                    pl.BlockSpec((T, H), lambda e, i, act: (0, 0)),
                    pl.BlockSpec((T, H), lambda e, i, act: (0, 0)),
                    pl.BlockSpec((T, E + 1), lambda e, i, act: (0, 0)),
                    pl.BlockSpec((1, 2, H, TI),
                                 lambda e, i, act: (e, 0, 0, i)),
                    pl.BlockSpec((1, TI, H), lambda e, i, act: (e, i, 0)),
                ],
                out_specs=pl.BlockSpec((T, H), lambda e, i, act: (0, 0)),
                scratch_shapes=[pltpu.VMEM((T, H), jnp.float32)]),
            out_shape=jax.ShapeDtypeStruct((T, H), dtype),
            compiler_params=pltpu.CompilerParams(
                dimension_semantics=("arbitrary", "arbitrary"),
                vmem_limit_bytes=_VMEM_LIMIT),
        )(active, h_attn, xn_post, scores, self.wgu_all, self.wdown_all)
        return out

    def __call__(self, hidden_states, freqs_ci, cu_seqlen_prefill=None,
                 kv_cache=None, slots=None, seqlen=None, adapter_data=None,
                 attention_mask=None, chunk_causal_mask=None,
                 position_ids=None, hpu_attention_meta=None):
        # TODO(synk): kv_cache.store / paged-attention decode path, LoRA
        # adapter_data, chunked-attention masks, tensor-parallel all-reduce
        # and the NoPE attn_temperature_tuning branch are not representable
        # in a self-contained kernel; the prefill/causal RoPE MoE path is
        # implemented.
        return self._fwd(hidden_states, freqs_ci)


# ---------------------------------------------------------------------------
# Pure-JAX reference (mirrors the PyTorch forward) for validation.  Matmul
# weights are quantized to bf16 (matching the kernel's storage dtype) so the
# comparison isolates kernel structure from the weight-quantization choice.
# ---------------------------------------------------------------------------
def _reference_decoder_layer(x, freqs_ci, p, *, num_heads, num_kv_heads,
                             head_dim, intermediate_size, num_experts, top_k,
                             eps, use_qk_norm):
    prec = jax.lax.Precision.HIGHEST
    q16 = lambda w: w.astype(jnp.bfloat16).astype(jnp.float32)
    T, H = x.shape
    groups = num_heads // num_kv_heads
    F = head_dim // 2

    def rmsnorm(h, w):
        hf = h.astype(jnp.float32)
        var = jnp.mean(hf * hf, axis=-1, keepdims=True)
        return (hf * jax.lax.rsqrt(var + eps)).astype(h.dtype) * w

    residual = x
    h1 = rmsnorm(x, p["ln_in"])

    q = jnp.matmul(h1, q16(p["wq"]), precision=prec).reshape(T, num_heads,
                                                             head_dim)
    k = jnp.matmul(h1, q16(p["wk"]), precision=prec).reshape(T, num_kv_heads,
                                                             head_dim)
    v = jnp.matmul(h1, q16(p["wv"]), precision=prec).reshape(T, num_kv_heads,
                                                             head_dim)

    cos = freqs_ci[..., 0].reshape(T, F)
    sin = freqs_ci[..., 1].reshape(T, F)

    def rope(t):
        tf = t.astype(jnp.float32).reshape(T, t.shape[1], F, 2)
        xr = tf[..., 0] * cos[:, None, :] - tf[..., 1] * sin[:, None, :]
        yr = tf[..., 0] * sin[:, None, :] + tf[..., 1] * cos[:, None, :]
        return jnp.stack([xr, yr], axis=-1).reshape(T, t.shape[1], head_dim)

    q = rope(q)
    k = rope(k)

    if use_qk_norm:
        def l2norm(t):
            tf = t.astype(jnp.float32)
            return tf * jax.lax.rsqrt(
                jnp.mean(tf * tf, axis=-1, keepdims=True) + eps)
        q = l2norm(q)
        k = l2norm(k)

    kr = jnp.repeat(k, groups, axis=1)
    vr = jnp.repeat(v, groups, axis=1)
    scores = jnp.einsum("tnd,snd->nts", q, kr,
                        precision=prec) * (head_dim ** -0.5)
    causal = jnp.tril(jnp.ones((T, T), dtype=bool))
    scores = jnp.where(causal[None, :, :], scores, jnp.float32(-1e30))
    probs = jax.nn.softmax(scores, axis=-1)
    ctx = jnp.einsum("nts,snd->tnd", probs, vr, precision=prec)
    attn_out = jnp.matmul(ctx.reshape(T, num_heads * head_dim), q16(p["wo"]),
                          precision=prec)

    h_attn = residual + attn_out
    residual2 = h_attn
    h2 = rmsnorm(h_attn, p["ln_post"])

    # MoE: router (top-k, sigmoid gating) + routed experts + shared expert.
    logits = jnp.matmul(h2, q16(p["wr"]), precision=prec)       # (T, E)
    _, top_idx = jax.lax.top_k(logits, top_k)
    sel = jnp.zeros_like(logits, dtype=bool)
    sel = sel.at[jnp.arange(T)[:, None], top_idx].set(True)
    gated = jnp.where(sel, logits, -jnp.inf)
    router_scores = jax.nn.sigmoid(gated.astype(jnp.float32))   # (T, E)

    routed_in = h2[None, :, :].astype(jnp.float32) * router_scores.T[:, :, None]
    gu = jnp.einsum("eth,ehk->etk", routed_in, q16(p["wgu"]), precision=prec)
    gate, up = gu[..., :intermediate_size], gu[..., intermediate_size:]
    routed_out = jnp.einsum("eti,eih->eth", jax.nn.silu(gate) * up,
                            q16(p["wdown"]), precision=prec).sum(axis=0)

    gu_s = jnp.matmul(h2, q16(p["wgu_shared"]), precision=prec)
    shared = jnp.matmul(
        jax.nn.silu(gu_s[:, :intermediate_size]) * gu_s[:, intermediate_size:],
        q16(p["wdown_shared"]), precision=prec)

    return residual2 + shared + routed_out


if __name__ == "__main__":
    key = jax.random.PRNGKey(0)
    T, H = 16, 128
    NH, NKV, HD = 4, 2, 32
    INTER, E, TOPK = 256, 4, 1
    EPS = 1e-5

    ks = jax.random.split(key, 13)

    def w(k, shape, scale=0.05):
        return scale * jax.random.normal(k, shape, dtype=jnp.float32)

    # Router weight: small random + strong read-out of the first E channels so
    # the top-k choice is decisively separated (robust numerical comparison).
    wr = w(ks[6], (H, E), 0.02)
    wr = wr.at[:E, :].add(jnp.eye(E, dtype=jnp.float32))

    params = {
        "ln_in": 1.0 + 0.1 * jax.random.normal(ks[0], (H,), dtype=jnp.float32),
        "wq": w(ks[1], (H, NH * HD)),
        "wk": w(ks[2], (H, NKV * HD)),
        "wv": w(ks[3], (H, NKV * HD)),
        "wo": w(ks[4], (NH * HD, H)),
        "ln_post": 1.0 + 0.1 * jax.random.normal(ks[5], (H,),
                                                 dtype=jnp.float32),
        "wr": wr,
        "wgu": w(ks[7], (E, H, 2 * INTER)),
        "wdown": w(ks[8], (E, INTER, H)),
        "wgu_shared": w(ks[9], (H, 2 * INTER)),
        "wdown_shared": w(ks[10], (INTER, H)),
    }

    hidden = jax.random.normal(ks[11], (T, H), dtype=jnp.float32)
    # Give each token a decisively preferred expert via the first E channels.
    route_bias = jnp.full((T, E), -3.0, dtype=jnp.float32)
    route_bias = route_bias.at[jnp.arange(T), jnp.arange(T) % E].set(3.0)
    hidden = hidden.at[:, :E].set(route_bias)

    # Rotary table (cos, sin) per position, as fed to the decoder layer.
    F = HD // 2
    inv_freq = 1.0 / (500000.0 ** (jnp.arange(F, dtype=jnp.float32) * 2.0 / HD))
    ang = jnp.arange(T, dtype=jnp.float32)[:, None] * inv_freq[None, :]
    freqs_ci = jnp.stack([jnp.cos(ang), jnp.sin(ang)], axis=-1)   # (T, F, 2)

    layer = Llama4TextDecoderLayerPallas(
        params, num_heads=NH, num_kv_heads=NKV, head_dim=HD,
        intermediate_size=INTER, num_experts=E, top_k=TOPK,
        rms_norm_eps=EPS, use_qk_norm=True, moe_block_i=128)

    out = layer(hidden, freqs_ci)
    out = jax.block_until_ready(out)

    assert out.shape == (T, H), out.shape
    assert out.dtype == hidden.dtype

    ref = _reference_decoder_layer(
        hidden, freqs_ci, params, num_heads=NH, num_kv_heads=NKV, head_dim=HD,
        intermediate_size=INTER, num_experts=E, top_k=TOPK, eps=EPS,
        use_qk_norm=True)
    max_diff = float(jnp.max(jnp.abs(out - ref)))
    assert jnp.allclose(out, ref, rtol=3e-2, atol=3e-2), (
        f"kernel/reference mismatch, max abs diff = {max_diff}")

    print("KERNEL_OK")
</pallas_src>

<mosaic_0001>
module attributes {stable_mosaic.version = 11 : i64} {
  func.func @_router_kernel(%arg0: memref<16x128xf32, #tpu.memory_space<vmem>>, %arg1: memref<1x128xf32, #tpu.memory_space<vmem>>, %arg2: memref<128x4xbf16, #tpu.memory_space<vmem>>, %arg3: memref<16x5xf32, #tpu.memory_space<vmem>>, %arg4: memref<16x128xbf16, #tpu.memory_space<vmem>>, %arg5: memref<1x5xi32, #tpu.memory_space<vmem>>) attributes {dimension_semantics = [], scalar_prefetch = 0 : i64, scratch_operands = 0 : i64, tpu.core_type = #tpu.core_type<tc>} {
    %c0 = arith.constant 0 : index
    %c0_0 = arith.constant 0 : index
    %0 = vector.load %arg0[%c0, %c0_0] : memref<16x128xf32, #tpu.memory_space<vmem>>, vector<16x128xf32>
    %1 = arith.mulf %0, %0 : vector<16x128xf32>
    %cst = arith.constant dense<0.000000e+00> : vector<16xf32>
    %2 = vector.multi_reduction <add>, %1, %cst [1] : vector<16x128xf32> to vector<16xf32>
    %3 = vector.shape_cast %2 : vector<16xf32> to vector<16x1xf32>
    %cst_1 = arith.constant 1.280000e+02 : f32
    %4 = vector.broadcast %cst_1 : f32 to vector<16x1xf32>
    %5 = arith.divf %3, %4 : vector<16x1xf32>
    %cst_2 = arith.constant 9.99999974E-6 : f32
    %6 = vector.broadcast %cst_2 : f32 to vector<16x1xf32>
    %7 = arith.addf %5, %6 : vector<16x1xf32>
    %8 = math.rsqrt %7 : vector<16x1xf32>
    %9 = vector.broadcast %8 : vector<16x1xf32> to vector<16x128xf32>
    %10 = arith.mulf %0, %9 : vector<16x128xf32>
    %c0_3 = arith.constant 0 : index
    %c0_4 = arith.constant 0 : index
    %11 = vector.load %arg1[%c0_3, %c0_4] : memref<1x128xf32, #tpu.memory_space<vmem>>, vector<1x128xf32>
    %12 = vector.broadcast %11 : vector<1x128xf32> to vector<16x128xf32>
    %13 = arith.mulf %10, %12 : vector<16x128xf32>
    %14 = arith.truncf %13 : vector<16x128xf32> to vector<16x128xbf16>
    %c0_5 = arith.constant 0 : index
    %c0_6 = arith.constant 0 : index
    %15 = vector.load %arg4[%c0_5, %c0_6] : memref<16x128xbf16, #tpu.memory_space<vmem>>, vector<16x128xbf16>
    tpu.vector_store %arg4[%c0_5, %c0_6], %14 {strides = array<i32>} : memref<16x128xbf16, #tpu.memory_space<vmem>>, vector<16x128xbf16>,
    %16 = arith.truncf %13 : vector<16x128xf32> to vector<16x128xbf16>
    %c0_7 = arith.constant 0 : index
    %c0_8 = arith.constant 0 : index
    %17 = vector.load %arg2[%c0_7, %c0_8] : memref<128x4xbf16, #tpu.memory_space<vmem>>, vector<128x4xbf16>
    %cst_9 = arith.constant dense<0.000000e+00> : vector<16x4xf32>
    %18 = tpu.matmul %16, %17, %cst_9 {dimension_numbers = #tpu.dot_dimension_numbers<[1], [0], [0], [1], [0, 0, 1, 1], [], []>} : vector<16x128xbf16>, vector<128x4xbf16>, vector<16x4xf32> -> vector<16x4xf32>
    %19 = tpu.iota {dimensions = array<i32: 1>} : vector<16x4xi32>
    %cst_10 = arith.constant 0.000000e+00 : f32
    %20 = vector.broadcast %cst_10 : f32 to vector<16x4xf32>
    %cst_11 = arith.constant dense<0xFF800000> : vector<16xf32>
    %21 = vector.multi_reduction <maximumf>, %18, %cst_11 [1] : vector<16x4xf32> to vector<16xf32>
    %22 = vector.shape_cast %21 : vector<16xf32> to vector<16x1xf32>
    %23 = vector.broadcast %22 : vector<16x1xf32> to vector<16x4xf32>
    %24 = arith.cmpf oeq, %18, %23 : vector<16x4xf32>
    %c4_i32 = arith.constant 4 : i32
    %25 = vector.broadcast %c4_i32 : i32 to vector<16x4xi32>
    %26 = arith.select %24, %19, %25 : vector<16x4xi1>, vector<16x4xi32>
    %cst_12 = arith.constant dense<2147483647> : vector<16xi32>
    %27 = vector.multi_reduction <minsi>, %26, %cst_12 [1] : vector<16x4xi32> to vector<16xi32>
    %28 = vector.shape_cast %27 : vector<16xi32> to vector<16x1xi32>
    %29 = vector.broadcast %28 : vector<16x1xi32> to vector<16x4xi32>
    %30 = arith.cmpi eq, %19, %29 : vector<16x4xi32>
    %31 = arith.extui %30 : vector<16x4xi1> to vector<16x4xi32>
    %32 = arith.sitofp %31 : vector<16x4xi32> to vector<16x4xf32>
    %33 = arith.maximumf %20, %32 : vector<16x4xf32>
    %cst_13 = arith.constant 0.000000e+00 : f32
    %34 = vector.broadcast %cst_13 : f32 to vector<16x4xf32>
    %35 = arith.cmpf ogt, %33, %34 : vector<16x4xf32>
    %36 = arith.negf %18 : vector<16x4xf32>
    %37 = math.exp %36 : vector<16x4xf32>
    %cst_14 = arith.constant 1.000000e+00 : f32
    %38 = vector.broadcast %cst_14 : f32 to vector<16x4xf32>
    %39 = arith.addf %38, %37 : vector<16x4xf32>
    %40 = arith.divf %38, %39 : vector<16x4xf32>
    %cst_15 = arith.constant 0.000000e+00 : f32
    %41 = vector.broadcast %cst_15 : f32 to vector<16x4xf32>
    %42 = arith.select %35, %40, %41 : vector<16x4xi1>, vector<16x4xf32>
    %cst_16 = arith.constant 1.000000e+00 : f32
    %43 = vector.broadcast %cst_16 : f32 to vector<16x1xf32>
    %44 = tpu.concatenate %42, %43 in 1 : vector<16x4xf32>, vector<16x1xf32> -> vector<16x5xf32>
    %c0_17 = arith.constant 0 : index
    %c0_18 = arith.constant 0 : index
    %45 = vector.load %arg3[%c0_17, %c0_18] : memref<16x5xf32, #tpu.memory_space<vmem>>, vector<16x5xf32>
    tpu.vector_store %arg3[%c0_17, %c0_18], %44 {strides = array<i32>} : memref<16x5xf32, #tpu.memory_space<vmem>>, vector<16x5xf32>,
    %cst_19 = arith.constant dense<0xFF800000> : vector<5xf32>
    %46 = vector.multi_reduction <maximumf>, %44, %cst_19 [0] : vector<16x5xf32> to vector<5xf32>
    %47 = vector.shape_cast %46 : vector<5xf32> to vector<1x5xf32>
    %cst_20 = arith.constant 0.000000e+00 : f32
    %48 = vector.broadcast %cst_20 : f32 to vector<1x5xf32>
    %49 = arith.cmpf ogt, %47, %48 : vector<1x5xf32>
    %50 = arith.extui %49 : vector<1x5xi1> to vector<1x5xi32>
    %c0_21 = arith.constant 0 : index
    %c0_22 = arith.constant 0 : index
    %51 = vector.load %arg5[%c0_21, %c0_22] : memref<1x5xi32, #tpu.memory_space<vmem>>, vector<1x5xi32>
    tpu.vector_store %arg5[%c0_21, %c0_22], %50 {strides = array<i32>} : memref<1x5xi32, #tpu.memory_space<vmem>>, vector<1x5xi32>,
    return
  }
}

module attributes {stable_mosaic.version = 11 : i64} {
  func.func @_moe_ffn_kernel(%arg0: i32, %arg1: i32, %arg2: memref<5xi32, #tpu.memory_space<smem>>, %arg3: memref<16x128xf32, #tpu.memory_space<vmem>>, %arg4: memref<16x128xbf16, #tpu.memory_space<vmem>>, %arg5: memref<16x5xf32, #tpu.memory_space<vmem>>, %arg6: memref<1x2x128x128xbf16, #tpu.memory_space<vmem>>, %arg7: memref<1x128x128xbf16, #tpu.memory_space<vmem>>, %arg8: memref<16x128xf32, #tpu.memory_space<vmem>>, %arg9: memref<16x128xf32, #tpu.memory_space<vmem>>) attributes {dimension_semantics = [#tpu.dimension_semantics<arbitrary>, #tpu.dimension_semantics<arbitrary>], iteration_bounds = array<i64: 5, 2>, scalar_prefetch = 1 : i64, scratch_operands = 1 : i64, tpu.core_type = #tpu.core_type<tc>, window_params = [{pipeline_mode = #tpu.pipeline_mode<synchronous>, transform_indices = @transform_0, window_bounds = array<i64: 16, 128>}, {pipeline_mode = #tpu.pipeline_mode<synchronous>, transform_indices = @transform_1, window_bounds = array<i64: 16, 128>}, {pipeline_mode = #tpu.pipeline_mode<synchronous>, transform_indices = @transform_2, window_bounds = array<i64: 16, 5>}, {transform_indices = @transform_3, window_bounds = array<i64: 1, 2, 128, 128>}, {transform_indices = @transform_4, window_bounds = array<i64: 1, 128, 128>}, {pipeline_mode = #tpu.pipeline_mode<synchronous>, transform_indices = @transform_5, window_bounds = array<i64: 16, 128>}]} {
    %c0_i32 = arith.constant 0 : i32
    %0 = arith.cmpi eq, %arg0, %c0_i32 : i32
    %c0_i32_0 = arith.constant 0 : i32
    %1 = arith.cmpi eq, %arg1, %c0_i32_0 : i32
    %2 = arith.andi %0, %1 : i1
    %3 = arith.extui %2 : i1 to i32
    %c0_i32_1 = arith.constant 0 : i32
    %4 = arith.cmpi ne, %3, %c0_i32_1 : i32
    scf.if %4 {
      %c0 = arith.constant 0 : index
      %c0_5 = arith.constant 0 : index
      %15 = vector.load %arg3[%c0, %c0_5] : memref<16x128xf32, #tpu.memory_space<vmem>>, vector<16x128xf32>
      %c0_6 = arith.constant 0 : index
      %c0_7 = arith.constant 0 : index
      %16 = vector.load %arg9[%c0_6, %c0_7] : memref<16x128xf32, #tpu.memory_space<vmem>>, vector<16x128xf32>
      tpu.vector_store %arg9[%c0_6, %c0_7], %15 {strides = array<i32>} : memref<16x128xf32, #tpu.memory_space<vmem>>, vector<16x128xf32>,
    } else {
    }
    %5 = arith.index_cast %arg0 : i32 to index
    %6 = memref.load %arg2[%5] : memref<5xi32, #tpu.memory_space<smem>>
    %c0_i32_2 = arith.constant 0 : i32
    %7 = arith.cmpi sgt, %6, %c0_i32_2 : i32
    %8 = arith.extui %7 : i1 to i32
    %c0_i32_3 = arith.constant 0 : i32
    %9 = arith.cmpi ne, %8, %c0_i32_3 : i32
    scf.if %9 {
      %c0 = arith.constant 0 : index
      %c0_5 = arith.constant 0 : index
      %15 = vector.load %arg5[%c0, %c0_5] : memref<16x5xf32, #tpu.memory_space<vmem>>, vector<16x5xf32>
      %16 = tpu.iota {dimensions = array<i32: 1>} : vector<16x5xi32>
      %17 = vector.broadcast %arg0 : i32 to vector<16x5xi32>
      %18 = arith.cmpi eq, %16, %17 : vector<16x5xi32>
      %cst = arith.constant 0.000000e+00 : f32
      %19 = vector.broadcast %cst : f32 to vector<16x5xf32>
      %20 = arith.select %18, %15, %19 : vector<16x5xi1>, vector<16x5xf32>
      %cst_6 = arith.constant dense<0.000000e+00> : vector<16xf32>
      %21 = vector.multi_reduction <add>, %20, %cst_6 [1] : vector<16x5xf32> to vector<16xf32>
      %22 = vector.shape_cast %21 : vector<16xf32> to vector<16x1xf32>
      %c0_7 = arith.constant 0 : index
      %c0_8 = arith.constant 0 : index
      %23 = vector.load %arg4[%c0_7, %c0_8] : memref<16x128xbf16, #tpu.memory_space<vmem>>, vector<16x128xbf16>
      %24 = arith.extf %23 : vector<16x128xbf16> to vector<16x128xf32>
      %25 = vector.broadcast %22 : vector<16x1xf32> to vector<16x128xf32>
      %26 = arith.mulf %24, %25 : vector<16x128xf32>
      %27 = arith.truncf %26 : vector<16x128xf32> to vector<16x128xbf16>
      %c0_9 = arith.constant 0 : index
      %c0_10 = arith.constant 0 : index
      %c0_11 = arith.constant 0 : index
      %c0_12 = arith.constant 0 : index
      %28 = vector.load %arg6[%c0_9, %c0_10, %c0_11, %c0_12] : memref<1x2x128x128xbf16, #tpu.memory_space<vmem>>, vector<1x1x128x128xbf16>
      %29 = vector.shape_cast %28 : vector<1x1x128x128xbf16> to vector<128x128xbf16>
      %cst_13 = arith.constant dense<0.000000e+00> : vector<16x128xf32>
      %30 = tpu.matmul %27, %29, %cst_13 {dimension_numbers = #tpu.dot_dimension_numbers<[1], [0], [0], [1], [0, 0, 1, 1], [], []>} : vector<16x128xbf16>, vector<128x128xbf16>, vector<16x128xf32> -> vector<16x128xf32>
      %c0_14 = arith.constant 0 : index
      %c1 = arith.constant 1 : index
      %c0_15 = arith.constant 0 : index
      %c0_16 = arith.constant 0 : index
      %31 = vector.load %arg6[%c0_14, %c1, %c0_15, %c0_16] : memref<1x2x128x128xbf16, #tpu.memory_space<vmem>>, vector<1x1x128x128xbf16>
      %32 = vector.shape_cast %31 : vector<1x1x128x128xbf16> to vector<128x128xbf16>
      %cst_17 = arith.constant dense<0.000000e+00> : vector<16x128xf32>
      %33 = tpu.matmul %27, %32, %cst_17 {dimension_numbers = #tpu.dot_dimension_numbers<[1], [0], [0], [1], [0, 0, 1, 1], [], []>} : vector<16x128xbf16>, vector<128x128xbf16>, vector<16x128xf32> -> vector<16x128xf32>
      %34 = arith.negf %30 : vector<16x128xf32>
      %35 = math.exp %34 : vector<16x128xf32>
      %cst_18 = arith.constant 1.000000e+00 : f32
      %36 = vector.broadcast %cst_18 : f32 to vector<16x128xf32>
      %37 = arith.addf %36, %35 : vector<16x128xf32>
      %38 = arith.divf %36, %37 : vector<16x128xf32>
      %39 = arith.mulf %30, %38 : vector<16x128xf32>
      %40 = arith.mulf %39, %33 : vector<16x128xf32>
      %41 = arith.truncf %40 : vector<16x128xf32> to vector<16x128xbf16>
      %c0_19 = arith.constant 0 : index
      %c0_20 = arith.constant 0 : index
      %42 = vector.load %arg9[%c0_19, %c0_20] : memref<16x128xf32, #tpu.memory_space<vmem>>, vector<16x128xf32>
      %c0_21 = arith.constant 0 : index
      %c0_22 = arith.constant 0 : index
      %c0_23 = arith.constant 0 : index
      %43 = vector.load %arg7[%c0_21, %c0_22, %c0_23] : memref<1x128x128xbf16, #tpu.memory_space<vmem>>, vector<1x128x128xbf16>
      %44 = vector.shape_cast %43 : vector<1x128x128xbf16> to vector<128x128xbf16>
      %cst_24 = arith.constant dense<0.000000e+00> : vector<16x128xf32>
      %45 = tpu.matmul %41, %44, %cst_24 {dimension_numbers = #tpu.dot_dimension_numbers<[1], [0], [0], [1], [0, 0, 1, 1], [], []>} : vector<16x128xbf16>, vector<128x128xbf16>, vector<16x128xf32> -> vector<16x128xf32>
      %46 = arith.addf %42, %45 : vector<16x128xf32>
      %c0_25 = arith.constant 0 : index
      %c0_26 = arith.constant 0 : index
      %47 = vector.load %arg9[%c0_25, %c0_26] : memref<16x128xf32, #tpu.memory_space<vmem>>, vector<16x128xf32>
      tpu.vector_store %arg9[%c0_25, %c0_26], %46 {strides = array<i32>} : memref<16x128xf32, #tpu.memory_space<vmem>>, vector<16x128xf32>,
    } else {
    }
    %c4_i32 = arith.constant 4 : i32
    %10 = arith.cmpi eq, %arg0, %c4_i32 : i32
    %c1_i32 = arith.constant 1 : i32
    %11 = arith.cmpi eq, %arg1, %c1_i32 : i32
    %12 = arith.andi %10, %11 : i1
    %13 = arith.extui %12 : i1 to i32
    %c0_i32_4 = arith.constant 0 : i32
    %14 = arith.cmpi ne, %13, %c0_i32_4 : i32
    scf.if %14 {
      %c0 = arith.constant 0 : index
      %c0_5 = arith.constant 0 : index
      %15 = vector.load %arg9[%c0, %c0_5] : memref<16x128xf32, #tpu.memory_space<vmem>>, vector<16x128xf32>
      %c0_6 = arith.constant 0 : index
      %c0_7 = arith.constant 0 : index
      %16 = vector.load %arg8[%c0_6, %c0_7] : memref<16x128xf32, #tpu.memory_space<vmem>>, vector<16x128xf32>
      tpu.vector_store %arg8[%c0_6, %c0_7], %15 {strides = array<i32>} : memref<16x128xf32, #tpu.memory_space<vmem>>, vector<16x128xf32>,
    } else {
    }
    return
  }
  func.func @transform_0(%arg0: i32, %arg1: i32, %arg2: memref<5xi32, #tpu.memory_space<smem>>) -> (i32, i32) {
    %c0_i32 = arith.constant 0 : i32
    %c0_i32_0 = arith.constant 0 : i32
    %c0_i32_1 = arith.constant 0 : i32
    return %c0_i32, %c0_i32_0 : i32, i32
  }
  func.func @transform_1(%arg0: i32, %arg1: i32, %arg2: memref<5xi32, #tpu.memory_space<smem>>) -> (i32, i32) {
    %c0_i32 = arith.constant 0 : i32
    %c0_i32_0 = arith.constant 0 : i32
    %c0_i32_1 = arith.constant 0 : i32
    return %c0_i32, %c0_i32_0 : i32, i32
  }
  func.func @transform_2(%arg0: i32, %arg1: i32, %arg2: memref<5xi32, #tpu.memory_space<smem>>) -> (i32, i32) {
    %c0_i32 = arith.constant 0 : i32
    %c0_i32_0 = arith.constant 0 : i32
    %c0_i32_1 = arith.constant 0 : i32
    return %c0_i32, %c0_i32_0 : i32, i32
  }
  func.func @transform_3(%arg0: i32, %arg1: i32, %arg2: memref<5xi32, #tpu.memory_space<smem>>) -> (i32, i32, i32, i32) {
    %c0_i32 = arith.constant 0 : i32
    %c0_i32_0 = arith.constant 0 : i32
    %c0_i32_1 = arith.constant 0 : i32
    return %arg0, %c0_i32, %c0_i32_0, %arg1 : i32, i32, i32, i32
  }
  func.func @transform_4(%arg0: i32, %arg1: i32, %arg2: memref<5xi32, #tpu.memory_space<smem>>) -> (i32, i32, i32) {
    %c0_i32 = arith.constant 0 : i32
    %c0_i32_0 = arith.constant 0 : i32
    return %arg0, %arg1, %c0_i32 : i32, i32, i32
  }
  func.func @transform_5(%arg0: i32, %arg1: i32, %arg2: memref<5xi32, #tpu.memory_space<smem>>) -> (i32, i32) {
    %c0_i32 = arith.constant 0 : i32
    %c0_i32_0 = arith.constant 0 : i32
    %c0_i32_1 = arith.constant 0 : i32
    return %c0_i32, %c0_i32_0 : i32, i32
  }
}

module attributes {stable_mosaic.version = 11 : i64} {
  func.func @_attn_group_kernel(%arg0: i32, %arg1: memref<16x128xf32, #tpu.memory_space<vmem>>, %arg2: memref<1x128xf32, #tpu.memory_space<vmem>>, %arg3: memref<16x16xf32, #tpu.memory_space<vmem>>, %arg4: memref<16x16xf32, #tpu.memory_space<vmem>>, %arg5: memref<1x128x128xbf16, #tpu.memory_space<vmem>>, %arg6: memref<1x64x128xbf16, #tpu.memory_space<vmem>>, %arg7: memref<16x128xf32, #tpu.memory_space<vmem>>, %arg8: memref<16x128xbf16, #tpu.memory_space<vmem>>, %arg9: memref<16x128xf32, #tpu.memory_space<vmem>>) attributes {dimension_semantics = [#tpu.dimension_semantics<arbitrary>], iteration_bounds = array<i64: 2>, scalar_prefetch = 0 : i64, scratch_operands = 2 : i64, tpu.core_type = #tpu.core_type<tc>, window_params = [{pipeline_mode = #tpu.pipeline_mode<synchronous>, transform_indices = @transform_0, window_bounds = array<i64: 16, 128>}, {pipeline_mode = #tpu.pipeline_mode<synchronous>, transform_indices = @transform_1, window_bounds = array<i64: 1, 128>}, {pipeline_mode = #tpu.pipeline_mode<synchronous>, transform_indices = @transform_2, window_bounds = array<i64: 16, 16>}, {pipeline_mode = #tpu.pipeline_mode<synchronous>, transform_indices = @transform_3, window_bounds = array<i64: 16, 16>}, {transform_indices = @transform_4, window_bounds = array<i64: 1, 128, 128>}, {transform_indices = @transform_5, window_bounds = array<i64: 1, 64, 128>}, {pipeline_mode = #tpu.pipeline_mode<synchronous>, transform_indices = @transform_6, window_bounds = array<i64: 16, 128>}]} {
    %c0_i32 = arith.constant 0 : i32
    %0 = arith.cmpi eq, %arg0, %c0_i32 : i32
    %1 = arith.extui %0 : i1 to i32
    %c0_i32_0 = arith.constant 0 : i32
    %2 = arith.cmpi ne, %1, %c0_i32_0 : i32
    scf.if %2 {
      %c0_46 = arith.constant 0 : index
      %c0_47 = arith.constant 0 : index
      %146 = vector.load %arg1[%c0_46, %c0_47] : memref<16x128xf32, #tpu.memory_space<vmem>>, vector<16x128xf32>
      %147 = arith.mulf %146, %146 : vector<16x128xf32>
      %cst_48 = arith.constant dense<0.000000e+00> : vector<16xf32>
      %148 = vector.multi_reduction <add>, %147, %cst_48 [1] : vector<16x128xf32> to vector<16xf32>
      %149 = vector.shape_cast %148 : vector<16xf32> to vector<16x1xf32>
      %cst_49 = arith.constant 1.280000e+02 : f32
      %150 = vector.broadcast %cst_49 : f32 to vector<16x1xf32>
      %151 = arith.divf %149, %150 : vector<16x1xf32>
      %cst_50 = arith.constant 9.99999974E-6 : f32
      %152 = vector.broadcast %cst_50 : f32 to vector<16x1xf32>
      %153 = arith.addf %151, %152 : vector<16x1xf32>
      %154 = math.rsqrt %153 : vector<16x1xf32>
      %155 = vector.broadcast %154 : vector<16x1xf32> to vector<16x128xf32>
      %156 = arith.mulf %146, %155 : vector<16x128xf32>
      %c0_51 = arith.constant 0 : index
      %c0_52 = arith.constant 0 : index
      %157 = vector.load %arg2[%c0_51, %c0_52] : memref<1x128xf32, #tpu.memory_space<vmem>>, vector<1x128xf32>
      %158 = vector.broadcast %157 : vector<1x128xf32> to vector<16x128xf32>
      %159 = arith.mulf %156, %158 : vector<16x128xf32>
      %160 = arith.truncf %159 : vector<16x128xf32> to vector<16x128xbf16>
      %c0_53 = arith.constant 0 : index
      %c0_54 = arith.constant 0 : index
      %161 = vector.load %arg8[%c0_53, %c0_54] : memref<16x128xbf16, #tpu.memory_space<vmem>>, vector<16x128xbf16>
      tpu.vector_store %arg8[%c0_53, %c0_54], %160 {strides = array<i32>} : memref<16x128xbf16, #tpu.memory_space<vmem>>, vector<16x128xbf16>,
      %c0_55 = arith.constant 0 : index
      %c0_56 = arith.constant 0 : index
      %162 = vector.load %arg9[%c0_55, %c0_56] : memref<16x128xf32, #tpu.memory_space<vmem>>, vector<16x128xf32>
      tpu.vector_store %arg9[%c0_55, %c0_56], %146 {strides = array<i32>} : memref<16x128xf32, #tpu.memory_space<vmem>>, vector<16x128xf32>,
    } else {
    }
    %c0 = arith.constant 0 : index
    %c0_1 = arith.constant 0 : index
    %3 = vector.load %arg8[%c0, %c0_1] : memref<16x128xbf16, #tpu.memory_space<vmem>>, vector<16x128xbf16>
    %c0_2 = arith.constant 0 : index
    %c0_3 = arith.constant 0 : index
    %c0_4 = arith.constant 0 : index
    %4 = vector.load %arg5[%c0_2, %c0_3, %c0_4] : memref<1x128x128xbf16, #tpu.memory_space<vmem>>, vector<1x128x128xbf16>
    %5 = vector.shape_cast %4 : vector<1x128x128xbf16> to vector<128x128xbf16>
    %cst = arith.constant dense<0.000000e+00> : vector<16x128xf32>
    %6 = tpu.matmul %3, %5, %cst {dimension_numbers = #tpu.dot_dimension_numbers<[1], [0], [0], [1], [0, 0, 1, 1], [], []>} : vector<16x128xbf16>, vector<128x128xbf16>, vector<16x128xf32> -> vector<16x128xf32>
    %c0_5 = arith.constant 0 : index
    %c0_6 = arith.constant 0 : index
    %7 = vector.load %arg3[%c0_5, %c0_6] : memref<16x16xf32, #tpu.memory_space<vmem>>, vector<16x16xf32>
    %c0_7 = arith.constant 0 : index
    %c0_8 = arith.constant 0 : index
    %8 = vector.load %arg4[%c0_7, %c0_8] : memref<16x16xf32, #tpu.memory_space<vmem>>, vector<16x16xf32>
    %9 = vector.extract_strided_slice %6 {offsets = [0, 64], sizes = [16, 16], strides = [1, 1]} : vector<16x128xf32> to vector<16x16xf32>
    %10 = vector.extract_strided_slice %6 {offsets = [0, 80], sizes = [16, 16], strides = [1, 1]} : vector<16x128xf32> to vector<16x16xf32>
    %11 = vector.extract_strided_slice %6 {offsets = [0, 96], sizes = [16, 32], strides = [1, 1]} : vector<16x128xf32> to vector<16x32xf32>
    %12 = arith.mulf %9, %7 : vector<16x16xf32>
    %13 = arith.mulf %10, %8 : vector<16x16xf32>
    %14 = arith.subf %12, %13 : vector<16x16xf32>
    %15 = arith.mulf %9, %8 : vector<16x16xf32>
    %16 = arith.mulf %10, %7 : vector<16x16xf32>
    %17 = arith.addf %15, %16 : vector<16x16xf32>
    %18 = arith.mulf %14, %14 : vector<16x16xf32>
    %cst_9 = arith.constant dense<0.000000e+00> : vector<16xf32>
    %19 = vector.multi_reduction <add>, %18, %cst_9 [1] : vector<16x16xf32> to vector<16xf32>
    %20 = vector.shape_cast %19 : vector<16xf32> to vector<16x1xf32>
    %21 = arith.mulf %17, %17 : vector<16x16xf32>
    %cst_10 = arith.constant dense<0.000000e+00> : vector<16xf32>
    %22 = vector.multi_reduction <add>, %21, %cst_10 [1] : vector<16x16xf32> to vector<16xf32>
    %23 = vector.shape_cast %22 : vector<16xf32> to vector<16x1xf32>
    %24 = arith.addf %20, %23 : vector<16x1xf32>
    %cst_11 = arith.constant 3.200000e+01 : f32
    %25 = vector.broadcast %cst_11 : f32 to vector<16x1xf32>
    %26 = arith.divf %24, %25 : vector<16x1xf32>
    %cst_12 = arith.constant 9.99999974E-6 : f32
    %27 = vector.broadcast %cst_12 : f32 to vector<16x1xf32>
    %28 = arith.addf %26, %27 : vector<16x1xf32>
    %29 = math.rsqrt %28 : vector<16x1xf32>
    %30 = vector.broadcast %29 : vector<16x1xf32> to vector<16x16xf32>
    %31 = arith.mulf %14, %30 : vector<16x16xf32>
    %32 = vector.broadcast %29 : vector<16x1xf32> to vector<16x16xf32>
    %33 = arith.mulf %17, %32 : vector<16x16xf32>
    %34 = arith.truncf %31 : vector<16x16xf32> to vector<16x16xbf16>
    %35 = arith.truncf %33 : vector<16x16xf32> to vector<16x16xbf16>
    %36 = arith.truncf %11 : vector<16x32xf32> to vector<16x32xbf16>
    %37 = tpu.iota {dimensions = array<i32: 0>} : vector<16x16xi32>
    %38 = tpu.iota {dimensions = array<i32: 1>} : vector<16x16xi32>
    %39 = arith.cmpi sge, %37, %38 : vector<16x16xi32>
    %cst_13 = arith.constant 0.000000e+00 : f32
    %cst_14 = arith.constant -1.000000e+30 : f32
    %40 = vector.broadcast %cst_13 : f32 to vector<16x16xf32>
    %41 = vector.broadcast %cst_14 : f32 to vector<16x16xf32>
    %42 = arith.select %39, %40, %41 : vector<16x16xi1>, vector<16x16xf32>
    %43 = vector.extract_strided_slice %6 {offsets = [0, 0], sizes = [16, 16], strides = [1, 1]} : vector<16x128xf32> to vector<16x16xf32>
    %44 = vector.extract_strided_slice %6 {offsets = [0, 16], sizes = [16, 16], strides = [1, 1]} : vector<16x128xf32> to vector<16x16xf32>
    %45 = arith.mulf %43, %7 : vector<16x16xf32>
    %46 = arith.mulf %44, %8 : vector<16x16xf32>
    %47 = arith.subf %45, %46 : vector<16x16xf32>
    %48 = arith.mulf %43, %8 : vector<16x16xf32>
    %49 = arith.mulf %44, %7 : vector<16x16xf32>
    %50 = arith.addf %48, %49 : vector<16x16xf32>
    %51 = arith.mulf %47, %47 : vector<16x16xf32>
    %cst_15 = arith.constant dense<0.000000e+00> : vector<16xf32>
    %52 = vector.multi_reduction <add>, %51, %cst_15 [1] : vector<16x16xf32> to vector<16xf32>
    %53 = vector.shape_cast %52 : vector<16xf32> to vector<16x1xf32>
    %54 = arith.mulf %50, %50 : vector<16x16xf32>
    %cst_16 = arith.constant dense<0.000000e+00> : vector<16xf32>
    %55 = vector.multi_reduction <add>, %54, %cst_16 [1] : vector<16x16xf32> to vector<16xf32>
    %56 = vector.shape_cast %55 : vector<16xf32> to vector<16x1xf32>
    %57 = arith.addf %53, %56 : vector<16x1xf32>
    %cst_17 = arith.constant 3.200000e+01 : f32
    %58 = vector.broadcast %cst_17 : f32 to vector<16x1xf32>
    %59 = arith.divf %57, %58 : vector<16x1xf32>
    %cst_18 = arith.constant 9.99999974E-6 : f32
    %60 = vector.broadcast %cst_18 : f32 to vector<16x1xf32>
    %61 = arith.addf %59, %60 : vector<16x1xf32>
    %62 = math.rsqrt %61 : vector<16x1xf32>
    %63 = vector.broadcast %62 : vector<16x1xf32> to vector<16x16xf32>
    %64 = arith.mulf %47, %63 : vector<16x16xf32>
    %65 = vector.broadcast %62 : vector<16x1xf32> to vector<16x16xf32>
    %66 = arith.mulf %50, %65 : vector<16x16xf32>
    %cst_19 = arith.constant 0.176776692 : f32
    %67 = vector.broadcast %cst_19 : f32 to vector<16x16xf32>
    %68 = arith.mulf %64, %67 : vector<16x16xf32>
    %69 = arith.truncf %68 : vector<16x16xf32> to vector<16x16xbf16>
    %cst_20 = arith.constant 0.176776692 : f32
    %70 = vector.broadcast %cst_20 : f32 to vector<16x16xf32>
    %71 = arith.mulf %66, %70 : vector<16x16xf32>
    %72 = arith.truncf %71 : vector<16x16xf32> to vector<16x16xbf16>
    %cst_21 = arith.constant dense<0.000000e+00> : vector<16x16xf32>
    %73 = tpu.matmul %69, %34, %cst_21 {dimension_numbers = #tpu.dot_dimension_numbers<[1], [1], [0], [0], [0, 0, 1, 0], [], []>} : vector<16x16xbf16>, vector<16x16xbf16>, vector<16x16xf32> -> vector<16x16xf32>
    %cst_22 = arith.constant dense<0.000000e+00> : vector<16x16xf32>
    %74 = tpu.matmul %72, %35, %cst_22 {dimension_numbers = #tpu.dot_dimension_numbers<[1], [1], [0], [0], [0, 0, 1, 0], [], []>} : vector<16x16xbf16>, vector<16x16xbf16>, vector<16x16xf32> -> vector<16x16xf32>
    %75 = arith.addf %73, %74 : vector<16x16xf32>
    %76 = arith.addf %75, %42 : vector<16x16xf32>
    %cst_23 = arith.constant dense<0xFF800000> : vector<16xf32>
    %77 = vector.multi_reduction <maximumf>, %76, %cst_23 [1] : vector<16x16xf32> to vector<16xf32>
    %78 = vector.shape_cast %77 : vector<16xf32> to vector<16x1xf32>
    %79 = vector.broadcast %78 : vector<16x1xf32> to vector<16x16xf32>
    %80 = arith.subf %76, %79 : vector<16x16xf32>
    %81 = math.exp %80 : vector<16x16xf32>
    %cst_24 = arith.constant dense<0.000000e+00> : vector<16xf32>
    %82 = vector.multi_reduction <add>, %81, %cst_24 [1] : vector<16x16xf32> to vector<16xf32>
    %83 = vector.shape_cast %82 : vector<16xf32> to vector<16x1xf32>
    %84 = arith.truncf %81 : vector<16x16xf32> to vector<16x16xbf16>
    %cst_25 = arith.constant dense<0.000000e+00> : vector<16x32xf32>
    %85 = tpu.matmul %84, %36, %cst_25 {dimension_numbers = #tpu.dot_dimension_numbers<[1], [0], [0], [1], [0, 0, 1, 1], [], []>} : vector<16x16xbf16>, vector<16x32xbf16>, vector<16x32xf32> -> vector<16x32xf32>
    %86 = tpu.reciprocal %83 {approx = true} : vector<16x1xf32> -> vector<16x1xf32>
    %87 = vector.broadcast %86 : vector<16x1xf32> to vector<16x32xf32>
    %88 = arith.mulf %85, %87 : vector<16x32xf32>
    %89 = vector.extract_strided_slice %6 {offsets = [0, 32], sizes = [16, 16], strides = [1, 1]} : vector<16x128xf32> to vector<16x16xf32>
    %90 = vector.extract_strided_slice %6 {offsets = [0, 48], sizes = [16, 16], strides = [1, 1]} : vector<16x128xf32> to vector<16x16xf32>
    %91 = arith.mulf %89, %7 : vector<16x16xf32>
    %92 = arith.mulf %90, %8 : vector<16x16xf32>
    %93 = arith.subf %91, %92 : vector<16x16xf32>
    %94 = arith.mulf %89, %8 : vector<16x16xf32>
    %95 = arith.mulf %90, %7 : vector<16x16xf32>
    %96 = arith.addf %94, %95 : vector<16x16xf32>
    %97 = arith.mulf %93, %93 : vector<16x16xf32>
    %cst_26 = arith.constant dense<0.000000e+00> : vector<16xf32>
    %98 = vector.multi_reduction <add>, %97, %cst_26 [1] : vector<16x16xf32> to vector<16xf32>
    %99 = vector.shape_cast %98 : vector<16xf32> to vector<16x1xf32>
    %100 = arith.mulf %96, %96 : vector<16x16xf32>
    %cst_27 = arith.constant dense<0.000000e+00> : vector<16xf32>
    %101 = vector.multi_reduction <add>, %100, %cst_27 [1] : vector<16x16xf32> to vector<16xf32>
    %102 = vector.shape_cast %101 : vector<16xf32> to vector<16x1xf32>
    %103 = arith.addf %99, %102 : vector<16x1xf32>
    %cst_28 = arith.constant 3.200000e+01 : f32
    %104 = vector.broadcast %cst_28 : f32 to vector<16x1xf32>
    %105 = arith.divf %103, %104 : vector<16x1xf32>
    %cst_29 = arith.constant 9.99999974E-6 : f32
    %106 = vector.broadcast %cst_29 : f32 to vector<16x1xf32>
    %107 = arith.addf %105, %106 : vector<16x1xf32>
    %108 = math.rsqrt %107 : vector<16x1xf32>
    %109 = vector.broadcast %108 : vector<16x1xf32> to vector<16x16xf32>
    %110 = arith.mulf %93, %109 : vector<16x16xf32>
    %111 = vector.broadcast %108 : vector<16x1xf32> to vector<16x16xf32>
    %112 = arith.mulf %96, %111 : vector<16x16xf32>
    %cst_30 = arith.constant 0.176776692 : f32
    %113 = vector.broadcast %cst_30 : f32 to vector<16x16xf32>
    %114 = arith.mulf %110, %113 : vector<16x16xf32>
    %115 = arith.truncf %114 : vector<16x16xf32> to vector<16x16xbf16>
    %cst_31 = arith.constant 0.176776692 : f32
    %116 = vector.broadcast %cst_31 : f32 to vector<16x16xf32>
    %117 = arith.mulf %112, %116 : vector<16x16xf32>
    %118 = arith.truncf %117 : vector<16x16xf32> to vector<16x16xbf16>
    %cst_32 = arith.constant dense<0.000000e+00> : vector<16x16xf32>
    %119 = tpu.matmul %115, %34, %cst_32 {dimension_numbers = #tpu.dot_dimension_numbers<[1], [1], [0], [0], [0, 0, 1, 0], [], []>} : vector<16x16xbf16>, vector<16x16xbf16>, vector<16x16xf32> -> vector<16x16xf32>
    %cst_33 = arith.constant dense<0.000000e+00> : vector<16x16xf32>
    %120 = tpu.matmul %118, %35, %cst_33 {dimension_numbers = #tpu.dot_dimension_numbers<[1], [1], [0], [0], [0, 0, 1, 0], [], []>} : vector<16x16xbf16>, vector<16x16xbf16>, vector<16x16xf32> -> vector<16x16xf32>
    %121 = arith.addf %119, %120 : vector<16x16xf32>
    %122 = arith.addf %121, %42 : vector<16x16xf32>
    %cst_34 = arith.constant dense<0xFF800000> : vector<16xf32>
    %123 = vector.multi_reduction <maximumf>, %122, %cst_34 [1] : vector<16x16xf32> to vector<16xf32>
    %124 = vector.shape_cast %123 : vector<16xf32> to vector<16x1xf32>
    %125 = vector.broadcast %124 : vector<16x1xf32> to vector<16x16xf32>
    %126 = arith.subf %122, %125 : vector<16x16xf32>
    %127 = math.exp %126 : vector<16x16xf32>
    %cst_35 = arith.constant dense<0.000000e+00> : vector<16xf32>
    %128 = vector.multi_reduction <add>, %127, %cst_35 [1] : vector<16x16xf32> to vector<16xf32>
    %129 = vector.shape_cast %128 : vector<16xf32> to vector<16x1xf32>
    %130 = arith.truncf %127 : vector<16x16xf32> to vector<16x16xbf16>
    %cst_36 = arith.constant dense<0.000000e+00> : vector<16x32xf32>
    %131 = tpu.matmul %130, %36, %cst_36 {dimension_numbers = #tpu.dot_dimension_numbers<[1], [0], [0], [1], [0, 0, 1, 1], [], []>} : vector<16x16xbf16>, vector<16x32xbf16>, vector<16x32xf32> -> vector<16x32xf32>
    %132 = tpu.reciprocal %129 {approx = true} : vector<16x1xf32> -> vector<16x1xf32>
    %133 = vector.broadcast %132 : vector<16x1xf32> to vector<16x32xf32>
    %134 = arith.mulf %131, %133 : vector<16x32xf32>
    %135 = tpu.concatenate %88, %134 in 1 : vector<16x32xf32>, vector<16x32xf32> -> vector<16x64xf32>
    %136 = arith.truncf %135 : vector<16x64xf32> to vector<16x64xbf16>
    %c0_37 = arith.constant 0 : index
    %c0_38 = arith.constant 0 : index
    %137 = vector.load %arg9[%c0_37, %c0_38] : memref<16x128xf32, #tpu.memory_space<vmem>>, vector<16x128xf32>
    %c0_39 = arith.constant 0 : index
    %c0_40 = arith.constant 0 : index
    %c0_41 = arith.constant 0 : index
    %138 = vector.load %arg6[%c0_39, %c0_40, %c0_41] : memref<1x64x128xbf16, #tpu.memory_space<vmem>>, vector<1x64x128xbf16>
    %139 = vector.shape_cast %138 : vector<1x64x128xbf16> to vector<64x128xbf16>
    %cst_42 = arith.constant dense<0.000000e+00> : vector<16x128xf32>
    %140 = tpu.matmul %136, %139, %cst_42 {dimension_numbers = #tpu.dot_dimension_numbers<[1], [0], [0], [1], [0, 0, 1, 1], [], []>} : vector<16x64xbf16>, vector<64x128xbf16>, vector<16x128xf32> -> vector<16x128xf32>
    %141 = arith.addf %137, %140 : vector<16x128xf32>
    %c0_43 = arith.constant 0 : index
    %c0_44 = arith.constant 0 : index
    %142 = vector.load %arg9[%c0_43, %c0_44] : memref<16x128xf32, #tpu.memory_space<vmem>>, vector<16x128xf32>
    tpu.vector_store %arg9[%c0_43, %c0_44], %141 {strides = array<i32>} : memref<16x128xf32, #tpu.memory_space<vmem>>, vector<16x128xf32>,
    %c1_i32 = arith.constant 1 : i32
    %143 = arith.cmpi eq, %arg0, %c1_i32 : i32
    %144 = arith.extui %143 : i1 to i32
    %c0_i32_45 = arith.constant 0 : i32
    %145 = arith.cmpi ne, %144, %c0_i32_45 : i32
    scf.if %145 {
      %c0_46 = arith.constant 0 : index
      %c0_47 = arith.constant 0 : index
      %146 = vector.load %arg9[%c0_46, %c0_47] : memref<16x128xf32, #tpu.memory_space<vmem>>, vector<16x128xf32>
      %c0_48 = arith.constant 0 : index
      %c0_49 = arith.constant 0 : index
      %147 = vector.load %arg7[%c0_48, %c0_49] : memref<16x128xf32, #tpu.memory_space<vmem>>, vector<16x128xf32>
      tpu.vector_store %arg7[%c0_48, %c0_49], %146 {strides = array<i32>} : memref<16x128xf32, #tpu.memory_space<vmem>>, vector<16x128xf32>,
    } else {
    }
    return
  }
  func.func @transform_0(%arg0: i32) -> (i32, i32) {
    %c0_i32 = arith.constant 0 : i32
    %c0_i32_0 = arith.constant 0 : i32
    %c0_i32_1 = arith.constant 0 : i32
    return %c0_i32, %c0_i32_0 : i32, i32
  }
  func.func @transform_1(%arg0: i32) -> (i32, i32) {
    %c0_i32 = arith.constant 0 : i32
    %c0_i32_0 = arith.constant 0 : i32
    %c0_i32_1 = arith.constant 0 : i32
    return %c0_i32, %c0_i32_0 : i32, i32
  }
  func.func @transform_2(%arg0: i32) -> (i32, i32) {
    %c0_i32 = arith.constant 0 : i32
    %c0_i32_0 = arith.constant 0 : i32
    %c0_i32_1 = arith.constant 0 : i32
    return %c0_i32, %c0_i32_0 : i32, i32
  }
  func.func @transform_3(%arg0: i32) -> (i32, i32) {
    %c0_i32 = arith.constant 0 : i32
    %c0_i32_0 = arith.constant 0 : i32
    %c0_i32_1 = arith.constant 0 : i32
    return %c0_i32, %c0_i32_0 : i32, i32
  }
  func.func @transform_4(%arg0: i32) -> (i32, i32, i32) {
    %c0_i32 = arith.constant 0 : i32
    %c0_i32_0 = arith.constant 0 : i32
    %c0_i32_1 = arith.constant 0 : i32
    return %arg0, %c0_i32, %c0_i32_0 : i32, i32, i32
  }
  func.func @transform_5(%arg0: i32) -> (i32, i32, i32) {
    %c0_i32 = arith.constant 0 : i32
    %c0_i32_0 = arith.constant 0 : i32
    %c0_i32_1 = arith.constant 0 : i32
    return %arg0, %c0_i32, %c0_i32_0 : i32, i32, i32
  }
  func.func @transform_6(%arg0: i32) -> (i32, i32) {
    %c0_i32 = arith.constant 0 : i32
    %c0_i32_0 = arith.constant 0 : i32
    %c0_i32_1 = arith.constant 0 : i32
    return %c0_i32, %c0_i32_0 : i32, i32
  }
}

</mosaic_0001>

<llo_original>
// kernel: _forward.4
$region0: #{_forward.4}
  #allocation0 [shape = 'u32[]', space=smem, size = 0x4, offset = 0x4, fixed_abs, tag = 'smem constant byte address 0x4 - core index']
  #allocation1 [shape = 'u32[144,128]{1,0:T(1,128)}', space=vmem, size = 0x12000, scoped, tag = 'internal scratch']
  %s0 = inlined_call_operand.vmem [shape: f32[16,128], index: 0, kind: input, shape index: {}]
  %s1 = inlined_call_operand.vmem [shape: f32[1,128], index: 1, kind: input, shape index: {}]
  %s2 = inlined_call_operand.vmem [shape: bf16[128,4], index: 2, kind: input, shape index: {}]
  %s3 = inlined_call_operand.vmem [shape: f32[16,5], index: 3, kind: output, shape index: {0}]
  %s4 = inlined_call_operand.vmem [shape: bf16[16,128], index: 4, kind: output, shape index: {1}]
  %s5 = inlined_call_operand.vmem [shape: s32[1,5], index: 5, kind: output, shape index: {2}]
  %6 = xla_tuple %s3, %s4, %s5
  %s7 = sld [smem:[#allocation0]]
  $region38: #{_forward.4} parent=0
    _
  %s9 = ssub.s32 1, %s7
  %s10 = scalar_select 0, %s9, %s7
  // Predicated region
  $region2: #{_forward.4} parent=0 // pred_check
    _
  $region3: #{_forward.4} parent=0 // pred_check_branch
    %12 = sbr.rel (0) target = $region5
  $region4: #{_forward.4} parent=0 // pred_region
    _
  $region5: #{_forward.4} parent=0 // pred_fallthru
    _
  // Predicated region
  $region6: #{_forward.4} parent=0 // pred_check
    _
  $region7: #{_forward.4} parent=0 // pred_check_branch
    %14 = sbr.rel (0) target = $region9
  $region8: #{_forward.4} parent=0 // pred_region
    _
  $region9: #{_forward.4} parent=0 // pred_fallthru
    _
  // Predicated region
  $region10: #{_forward.4} parent=0 // pred_check
    _
  $region11: #{_forward.4} parent=0 // pred_check_branch
    %16 = sbr.rel (0) target = $region13
  $region12: #{_forward.4} parent=0 // pred_region
    _
  $region13: #{_forward.4} parent=0 // pred_fallthru
    _
  %v18 = vld [vmem:[%s0] sm:$0xff]
  %v19 = vld [vmem:[%s0 + $0x8] sm:$0xff]
  %v20 = vmul.f32 %v18, %v18
  %v21 = vmul.f32 %v19, %v19
  %22 = vadd.xlane.f32.xlu0 %v20
  %v23 = vpop.xlane.xlu0 %22
  %24 = vadd.xlane.f32.xlu0 %v21
  %v25 = vpop.xlane.xlu0 %24
  %v26 = vrcp.pop 128.0
  %v27 = vmul.f32 %v23, %v26
  %v28 = vmul.f32 %v25, %v26
  %v29 = vadd.f32 %v27, 1e-05
  %v30 = vadd.f32 %v28, 1e-05
  %v31 = vrsqrt.pop %v29
  %v32 = vrsqrt.pop %v30
  %v33 = vmul.f32 %v18, %v31
  %v34 = vmul.f32 %v19, %v32
  %v35 = vld [vmem:[%s1] sm:$0x1]
  %v37 = vlaneseq
  %v38 = vshrl.u32 %v37, 7
  %v39 = vsub.s32 0, %v38
  %v40 = vrot.slane %v35, %v39
  %v42 = vmul.f32 %v33, %v40
  %v43 = vmul.f32 %v34, %v40
  %v44 = vpack.c.bf16 %v43, %v42
  %v46 = vunpack.c.l.b16 %v44
  %v47 = vunpack.c.h.b16 %v44
  %v48 = vpack.c.b16 %v46, %v46
  %v49 = vpack.c.b16 %v47, %v47
  %52 = vst [vmem:[%s4] sm:$0xf] %v48
  %53 = vst [vmem:[%s4 + $0x4] sm:$0xf] %v49
  %v54 = vld [vmem:[%s2] sm:$0xf]
  %v55 = vld [vmem:[%s2 + $0x4] sm:$0xf]
  %v56 = vld [vmem:[%s2 + $0x8] sm:$0xf]
  %v57 = vld [vmem:[%s2 + $0xc] sm:$0xf]
  %v58 = vld [vmem:[%s2 + $0x10] sm:$0xf]
  %v59 = vld [vmem:[%s2 + $0x14] sm:$0xf]
  %v60 = vld [vmem:[%s2 + $0x18] sm:$0xf]
  %v61 = vld [vmem:[%s2 + $0x1c] sm:$0xf]
  %v62 = vld [vmem:[%s2 + $0x20] sm:$0xf]
  %v63 = vld [vmem:[%s2 + $0x24] sm:$0xf]
  %v64 = vld [vmem:[%s2 + $0x28] sm:$0xf]
  %v65 = vld [vmem:[%s2 + $0x2c] sm:$0xf]
  %v66 = vld [vmem:[%s2 + $0x30] sm:$0xf]
  %v67 = vld [vmem:[%s2 + $0x34] sm:$0xf]
  %v68 = vld [vmem:[%s2 + $0x38] sm:$0xf]
  %v69 = vld [vmem:[%s2 + $0x3c] sm:$0xf]
  %v86 = vunpack.c.l.b16 %v54
  %v87 = vunpack.c.l.b16 %v55
  %v88 = vunpack.c.l.b16 %v56
  %v89 = vunpack.c.l.b16 %v57
  %v90 = vunpack.c.l.b16 %v58
  %v91 = vunpack.c.l.b16 %v59
  %v92 = vunpack.c.l.b16 %v60
  %v93 = vunpack.c.l.b16 %v61
  %v94 = vunpack.c.l.b16 %v62
  %v95 = vunpack.c.l.b16 %v63
  %v96 = vunpack.c.l.b16 %v64
  %v97 = vunpack.c.l.b16 %v65
  %v98 = vunpack.c.l.b16 %v66
  %v99 = vunpack.c.l.b16 %v67
  %v100 = vunpack.c.l.b16 %v68
  %v101 = vunpack.c.l.b16 %v69
  %v102 = vpack.c.b16 %v87, %v86
  %v103 = vpack.c.b16 %v89, %v88
  %v104 = vpack.c.b16 %v91, %v90
  %v105 = vpack.c.b16 %v93, %v92
  %v106 = vpack.c.b16 %v95, %v94
  %v107 = vpack.c.b16 %v97, %v96
  %v108 = vpack.c.b16 %v99, %v98
  %v109 = vpack.c.b16 %v101, %v100
  %118 = vmatprep.subr.bf16.mxu0 0
  %119 = vmatpush1.bf16.msra.mxu0 %v109
  %120 = vmatprep.subr.bf16.mxu0 0
  %121 = vmatpush1.bf16.msra.mxu0 %v108
  %122 = vmatprep.subr.bf16.mxu0 0
  %123 = vmatpush1.bf16.msra.mxu0 %v107
  %124 = vmatprep.subr.bf16.mxu0 0
  %125 = vmatpush1.bf16.msra.mxu0 %v106
  %126 = vmatprep.subr.bf16.mxu0 0
  %127 = vmatpush1.bf16.msra.mxu0 %v105
  %128 = vmatprep.subr.bf16.mxu0 0
  %129 = vmatpush1.bf16.msra.mxu0 %v104
  %130 = vmatprep.subr.bf16.mxu0 0
  %131 = vmatpush1.bf16.msra.mxu0 %v103
  %132 = vmatprep.subr.bf16.mxu0 0
  %133 = vmatpush1.bf16.msra.mxu0 %v102
  %134 = vmatprep.subr.bf16.mxu0 0
  %135 = vmatpush2.bf16.msra.mxu0 0
  %136 = vmatprep.subr.bf16.mxu0 0
  %137 = vmatpush2.bf16.msra.mxu0 0
  %138 = vmatprep.subr.bf16.mxu0 0
  %139 = vmatpush2.bf16.msra.mxu0 0
  %140 = vmatprep.subr.bf16.mxu0 0
  %141 = vmatpush2.bf16.msra.mxu0 0
  %142 = vmatprep.subr.bf16.mxu0 0
  %143 = vmatpush2.bf16.msra.mxu0 0
  %144 = vmatprep.subr.bf16.mxu0 0
  %145 = vmatpush2.bf16.msra.mxu0 0
  %146 = vmatprep.subr.bf16.mxu0 0
  %147 = vmatpush2.bf16.msra.mxu0 0
  %148 = vmatprep.subr.bf16.mxu0 0
  %149 = vmatpush2.bf16.msra.mxu0 0
  %150 = vmatprep.mubr.bf16.mxu0 0
  %151 = vmatmul.mubr.bf16.gmra.mxu0 %v44
  %v152 = vpop.f32.mrf.mxu0
  %v153 = vadd.f32 0.0, %v152
  %v154 = vpop.f32.mrf.mxu0
  %v155 = vpop.f32.mrf.mxu0
  %v156 = vadd.f32 0.0, %v155
  %v157 = vpop.f32.mrf.mxu0
  %158 = vdwg.mxu0
  %v159 = vlaneseq
  %v160 = vand.u32 %v159, 127
  %vm161 = vcmask 31744
  %v162 = vsel %vm161, %v153, -inf
  %163 = vmax.xlane.f32.xlu0 %v162
  %v164 = vpop.xlane.xlu0 %163
  %v165 = vsel %vm161, %v156, -inf
  %166 = vmax.xlane.f32.xlu0 %v165
  %v167 = vpop.xlane.xlu0 %166
  %vm168 = vcmp.eq.f32.partialorder %v153, %v164
  %vm169 = vcmp.eq.f32.partialorder %v156, %v167
  %v170 = vsel %vm168, %v160, 4
  %v171 = vsel %vm169, %v160, 4
  %v172 = vsel %vm161, %v170, 2147483647
  %v173 = vand.u32 %v172, 65535
  %v174 = vshra.s32 %v172, 16
  %v175 = vcvt.s32.f32 %v173
  %v176 = vcvt.s32.f32 %v174
  %177 = vmin.xlane.f32.xlu0 %v176
  %v178 = vpop.xlane.xlu0 %177
  %vm179 = vcmp.eq.f32.partialorder %v176, %v178
  %v180 = vsel %vm179, %v175, inf
  %181 = vmin.xlane.f32.xlu0 %v180
  %v182 = vpop.xlane.xlu0 %181
  %v183 = vcvt.f32.s32 %v182
  %v184 = vcvt.f32.s32 %v178
  %v185 = vshll.u32 %v184, 16
  %v186 = vadd.s32 %v185, %v183
  %v187 = vsel %vm161, %v171, 2147483647
  %v188 = vand.u32 %v187, 65535
  %v189 = vshra.s32 %v187, 16
  %v190 = vcvt.s32.f32 %v188
  %v191 = vcvt.s32.f32 %v189
  %192 = vmin.xlane.f32.xlu0 %v191
  %v193 = vpop.xlane.xlu0 %192
  %vm194 = vcmp.eq.f32.partialorder %v191, %v193
  %v195 = vsel %vm194, %v190, inf
  %196 = vmin.xlane.f32.xlu0 %v195
  %v197 = vpop.xlane.xlu0 %196
  %v198 = vcvt.f32.s32 %v197
  %v199 = vcvt.f32.s32 %v193
  %v200 = vshll.u32 %v199, 16
  %v201 = vadd.s32 %v200, %v198
  %vm202 = vcmp.eq.s32.totalorder %v160, %v186
  %vm203 = vcmp.eq.s32.totalorder %v160, %v201
  %v204 = vsel %vm202, 1, 0
  %v205 = vsel %vm203, 1, 0
  %v206 = vcvt.s32.f32 %v204
  %v207 = vcvt.s32.f32 %v205
  %v208 = vmax.f32 %v206, 0.0
  %v209 = vmax.f32 %v207, 0.0
  %vm210 = vcmp.gt.f32.partialorder %v208, 0.0
  %vm211 = vcmp.gt.f32.partialorder %v209, 0.0
  %v212 = vxor.u32 %v153, 2147483648
  %v213 = vxor.u32 %v156, 2147483648
  %v214 = vmul.f32 %v212, 1.442695
  %v215 = vpow.pop %v214
  %v216 = vmul.f32 %v213, 1.442695
  %v217 = vpow.pop %v216
  %v218 = vadd.f32 %v215, 1.0
  %v219 = vadd.f32 %v217, 1.0
  %v220 = vrcp.pop %v218
  %v221 = vmul.f32 1.0, %v220
  %v222 = vrcp.pop %v219
  %v223 = vmul.f32 1.0, %v222
  %v224 = vsel %vm210, %v221, 0.0
  %v225 = vsel %vm211, %v223, 0.0
  %v226 = vsel %vm161, %v224, 1.0
  %v227 = vsel %vm161, %v225, 1.0
  %vm228 = vcmask 39936
  %229 = vst.msk [vmem:[%s3] sm:$0xff] %vm228, %v226
  %230 = vst.msk [vmem:[%s3 + $0x8] sm:$0xff] %vm228, %v227
  %v231 = vsel %vm228, %v226, -inf
  %v232 = vsel %vm228, %v227, -inf
  %v233 = vmax.f32 %v231, %v232
  %v234 = vrot.slane %v233, 4
  %v235 = vmax.f32 %v233, %v234
  %v236 = vrot.slane %v235, 2
  %v237 = vmax.f32 %v235, %v236
  %v238 = vrot.slane %v237, 1
  %v239 = vmax.f32 %v237, %v238
  %vm240 = vcmp.gt.f32.partialorder %v239, 0.0
  %v241 = vsel %vm240, 1, 0
  %vm242 = vcmask 32768
  %243 = vst.msk [vmem:[%s5] sm:$0x1] %vm242, %v241
  // Predicated region
  $region14: #{_forward.4} parent=0 // pred_check
    _
  $region15: #{_forward.4} parent=0 // pred_check_branch
    %245 = sbr.rel (0) target = $region17
  $region16: #{_forward.4} parent=0 // pred_region
    _
  $region17: #{_forward.4} parent=0 // pred_fallthru
    _
  // Predicated region
  $region18: #{_forward.4} parent=0 // pred_check
    _
  $region19: #{_forward.4} parent=0 // pred_check_branch
    %247 = sbr.rel (0) target = $region21
  $region20: #{_forward.4} parent=0 // pred_region
    _
  $region21: #{_forward.4} parent=0 // pred_fallthru
    _
  // Predicated region
  $region22: #{_forward.4} parent=0 // pred_check
    _
  $region23: #{_forward.4} parent=0 // pred_check_branch
    %249 = sbr.rel (0) target = $region25
  $region24: #{_forward.4} parent=0 // pred_region
    _
  $region25: #{_forward.4} parent=0 // pred_fallthru
    _
  // Predicated region
  $region26: #{_forward.4} parent=0 // pred_check
    _
  $region27: #{_forward.4} parent=0 // pred_check_branch
    %251 = sbr.rel (0) target = $region29
  $region28: #{_forward.4} parent=0 // pred_region
    _
  $region29: #{_forward.4} parent=0 // pred_fallthru
    _
  // Predicated region
  $region30: #{_forward.4} parent=0 // pred_check
    _
  $region31: #{_forward.4} parent=0 // pred_check_branch
    %253 = sbr.rel (0) target = $region33
  $region32: #{_forward.4} parent=0 // pred_region
    _
  $region33: #{_forward.4} parent=0 // pred_fallthru
    _
  // Predicated region
  $region34: #{_forward.4} parent=0 // pred_check
    _
  $region35: #{_forward.4} parent=0 // pred_check_branch
    %255 = sbr.rel (0) target = $region37
  $region36: #{_forward.4} parent=0 // pred_region
    _
  $region37: #{_forward.4} parent=0 // pred_fallthru
    _

// kernel: _forward.5
$region0: #{_forward.5}
  #allocation0 [shape = 'u32[]', space=smem, size = 0x4, offset = 0x4, fixed_abs, tag = 'smem constant byte address 0x4 - core index']
  #allocation1 [shape = 'u32[144,128]{1,0:T(1,128)}', space=vmem, size = 0x12000, scoped, tag = 'internal scratch']
  #allocation2 [shape = 'f32[16,128]{1,0:T(8,128)}', space=vmem, size = 0x2000, scoped, tag = 'scratch operand']
  #allocation3 [shape = 's32[1]{0}', space=sflag, size = 0x4, scoped, tag = 'scoped memory for _forward.5']
  #allocation4 [shape = 'u8[512]{0}', space=smem, size = 0x200, scoped, tag = 'prefetched SMEM operand 0']
  %s0 = inlined_call_operand.vmem [shape: s32[5], index: 0, kind: input, shape index: {}]
  %s1 = inlined_call_operand.vmem [shape: f32[16,128], index: 1, kind: input, shape index: {}]
  %s2 = inlined_call_operand.vmem [shape: bf16[16,128], index: 2, kind: input, shape index: {}]
  %s3 = inlined_call_operand.vmem [shape: f32[16,5], index: 3, kind: input, shape index: {}]
  %s4 = inlined_call_operand.hbm [shape: bf16[5,2,128,256], index: 4, kind: input, shape index: {}]
  %s5 = inlined_call_operand.hbm [shape: bf16[5,256,128], index: 5, kind: input, shape index: {}]
  %s6 = inlined_call_operand.hbm [shape: f32[16,128], index: 6, kind: output, shape index: {}]
  %s7 = sld [smem:[#allocation0]]
  $region73: #{_forward.5} parent=0
    _
  %s9 = ssub.s32 1, %s7
  %s10 = scalar_select 0, %s9, %s7
  %s11 = sshll.u32 %s0, 4
  %s12 = int_to_ptr.vmem [resolvable:$true] %s11
  %14 = dma.vmem_to_smem %s12, 16, [#allocation4], [#allocation3]
  %15 = dma.done [#allocation3], 16
  %16 = sfence
  $region1: #{_forward.5} parent=0
    #allocation5 [shape = 'u8[131072]{0}', space=vmem, size = 0x20000, scoped, tag = 'input window, operand 4']
    #allocation6 [shape = 's32[2]{0}', space=sflag, size = 0x8, scoped, tag = 'scoped memory for _forward.5']
    #allocation7 [shape = 's32[2]{0}', space=sflag, size = 0x8, scoped, tag = 'scoped memory for _forward.5']
    #allocation8 [shape = 'u8[65536]{0}', space=vmem, size = 0x10000, scoped, tag = 'input window, operand 5']
    #allocation9 [shape = 's32[2]{0}', space=sflag, size = 0x8, scoped, tag = 'scoped memory for _forward.5']
    #allocation10 [shape = 'u8[8192]{0}', space=vmem, size = 0x2000, scoped, tag = 'output window, operand 0, single buffered']
    %17 = vsyncpa [#allocation6], 0
    %s18 = scalar_lea.sflag [#allocation6], 1
    %19 = vsyncpa %s18, 0
    %20 = vsyncpa [#allocation9], 0
    %s21 = scalar_lea.sflag [#allocation9], 1
    %22 = vsyncpa %s21, 0
    %23 = vsyncpa [#allocation7], 0
    loop: start=0, step=1, limit=12
    $region2: #{_forward.5} parent=1 // loop_pre_header
      _
    $region3: #{_forward.5} parent=1 // loop_header
      %s25 = sphi 0, %s29
      %p26 = scmp.ge.s32.totalorder %s25, 12
      %s32 = sphi 0, %s44
      %s33 = sphi 0, %s40
      %s34 = sphi 0, %s32
      %s35 = sphi 0, %s33
      %s36 = sphi 0, %s34
      %s37 = sphi 0, %s35
      %s45 = sphi 0, %s45
      %s47 = sphi 0, %s45
      %s48 = sphi 0, %s47
      %s62 = sphi 0, %s48
      %s66 = sphi 0, %s66
      %s68 = sphi 0, %s66
      %s69 = sphi 0, %s68
      %s83 = sphi 0, %s69
      %s87 = sphi 0, %s87
      %s89 = sphi 0, %s87
      %s90 = sphi 0, %s89
      %s104 = sphi 0, %s90
      %s112 = sphi 0, %s114
      %s115 = sphi 0, %s112
      %s116 = sphi 0, %s115
      %s132 = sphi 0, %s116
      %s140 = sphi 0, %s142
      %s143 = sphi 0, %s140
      %s144 = sphi 0, %s143
      %s160 = sphi 0, %s144
      %s164 = sphi 0, %s164
      %s166 = sphi 0, %s164
      %s167 = sphi 0, %s166
      %s181 = sphi 0, %s167
    $region4: #{_forward.5} parent=1 // loop_header_branch
      %28 = sbr.rel (%p26) target = $region8
    $region5: #{_forward.5} parent=1 // loop_body
      %s30 = ssub.s32 %s25, 1
      %s31 = ssub.s32 %s25, 2
      %s38 = sadd.s32 1, %s33
      %p39 = scmp.ge.s32.totalorder %s38, 2
      %s40 = scalar_select %p39, 0, %s38
      %s41 = sadd.s32 1, %s32
      %s42 = scalar_select %p39, %s41, %s32
      %p43 = scmp.ge.s32.totalorder %s42, 5
      %s44 = scalar_select %p43, 0, %s42
      %s46 = sadd.s32 %s45, 1
      %p49 = scmp.eq.s32.totalorder %s25, 9
      %p50 = scmp.ne.s32.totalorder %s45, %s47
      %p51 = scmp.eq.s32.totalorder %s25, 0
      %p52 = por %p50, %p51
      %p53 = scmp.ne.s32.totalorder %s45, %s47
      %p54 = scmp.eq.s32.totalorder %s30, 9
      %p55 = por %p53, %p54
      %p56 = scmp.ne.s32.totalorder %s47, %s48
      %p57 = scmp.eq.s32.totalorder %s30, 0
      %p58 = por %p56, %p57
      %p59 = scmp.ne.s32.totalorder %s47, %s48
      %p60 = scmp.eq.s32.totalorder %s31, 9
      %p61 = por %p59, %p60
      %p63 = scmp.ne.s32.totalorder %s48, %s62
      %p64 = scmp.eq.s32.totalorder %s31, 0
      %p65 = por %p63, %p64
      %s67 = sadd.s32 %s66, 1
      %p70 = scmp.eq.s32.totalorder %s25, 9
      %p71 = scmp.ne.s32.totalorder %s66, %s68
      %p72 = scmp.eq.s32.totalorder %s25, 0
      %p73 = por %p71, %p72
      %p74 = scmp.ne.s32.totalorder %s66, %s68
      %p75 = scmp.eq.s32.totalorder %s30, 9
      %p76 = por %p74, %p75
      %p77 = scmp.ne.s32.totalorder %s68, %s69
      %p78 = scmp.eq.s32.totalorder %s30, 0
      %p79 = por %p77, %p78
      %p80 = scmp.ne.s32.totalorder %s68, %s69
      %p81 = scmp.eq.s32.totalorder %s31, 9
      %p82 = por %p80, %p81
      %p84 = scmp.ne.s32.totalorder %s69, %s83
      %p85 = scmp.eq.s32.totalorder %s31, 0
      %p86 = por %p84, %p85
      %s88 = sadd.s32 %s87, 1
      %p91 = scmp.eq.s32.totalorder %s25, 9
      %p92 = scmp.ne.s32.totalorder %s87, %s89
      %p93 = scmp.eq.s32.totalorder %s25, 0
      %p94 = por %p92, %p93
      %p95 = scmp.ne.s32.totalorder %s87, %s89
      %p96 = scmp.eq.s32.totalorder %s30, 9
      %p97 = por %p95, %p96
      %p98 = scmp.ne.s32.totalorder %s89, %s90
      %p99 = scmp.eq.s32.totalorder %s30, 0
      %p100 = por %p98, %p99
      %p101 = scmp.ne.s32.totalorder %s89, %s90
      %p102 = scmp.eq.s32.totalorder %s31, 9
      %p103 = por %p101, %p102
      %p105 = scmp.ne.s32.totalorder %s90, %s104
      %p106 = scmp.eq.s32.totalorder %s31, 0
      %p107 = por %p105, %p106
      %s108 = ssub.s32 %s32, %s44
      %s109 = ssub.s32 %s33, %s40
      %s110 = sor.u32 %s108, %s109
      %p111 = scmp.eq.s32.totalorder %s110, 0
      %s113 = sadd.s32 %s112, 1
      %s114 = scalar_select %p111, %s112, %s113
      %p117 = pneg %p111
      %p118 = scmp.eq.s32.totalorder %s25, 9
      %p119 = por %p117, %p118
      %p120 = scmp.ne.s32.totalorder %s112, %s115
      %p121 = scmp.eq.s32.totalorder %s25, 0
      %p122 = por %p120, %p121
      %p123 = scmp.ne.s32.totalorder %s112, %s115
      %p124 = scmp.eq.s32.totalorder %s30, 9
      %p125 = por %p123, %p124
      %p126 = scmp.ne.s32.totalorder %s115, %s116
      %p127 = scmp.eq.s32.totalorder %s30, 0
      %p128 = por %p126, %p127
      %p129 = scmp.ne.s32.totalorder %s115, %s116
      %p130 = scmp.eq.s32.totalorder %s31, 9
      %p131 = por %p129, %p130
      %p133 = scmp.ne.s32.totalorder %s116, %s132
      %p134 = scmp.eq.s32.totalorder %s31, 0
      %p135 = por %p133, %p134
      %s136 = ssub.s32 %s32, %s44
      %s137 = ssub.s32 %s33, %s40
      %s138 = sor.u32 %s136, %s137
      %p139 = scmp.eq.s32.totalorder %s138, 0
      %s141 = sadd.s32 %s140, 1
      %s142 = scalar_select %p139, %s140, %s141
      %p145 = pneg %p139
      %p146 = scmp.eq.s32.totalorder %s25, 9
      %p147 = por %p145, %p146
      %p148 = scmp.ne.s32.totalorder %s140, %s143
      %p149 = scmp.eq.s32.totalorder %s25, 0
      %p150 = por %p148, %p149
      %p151 = scmp.ne.s32.totalorder %s140, %s143
      %p152 = scmp.eq.s32.totalorder %s30, 9
      %p153 = por %p151, %p152
      %p154 = scmp.ne.s32.totalorder %s143, %s144
      %p155 = scmp.eq.s32.totalorder %s30, 0
      %p156 = por %p154, %p155
      %p157 = scmp.ne.s32.totalorder %s143, %s144
      %p158 = scmp.eq.s32.totalorder %s31, 9
      %p159 = por %p157, %p158
      %p161 = scmp.ne.s32.totalorder %s144, %s160
      %p162 = scmp.eq.s32.totalorder %s31, 0
      %p163 = por %p161, %p162
      %s165 = sadd.s32 %s164, 1
      %p168 = scmp.eq.s32.totalorder %s25, 9
      %p169 = scmp.ne.s32.totalorder %s164, %s166
      %p170 = scmp.eq.s32.totalorder %s25, 0
      %p171 = por %p169, %p170
      %p172 = scmp.ne.s32.totalorder %s164, %s166
      %p173 = scmp.eq.s32.totalorder %s30, 9
      %p174 = por %p172, %p173
      %p175 = scmp.ne.s32.totalorder %s166, %s167
      %p176 = scmp.eq.s32.totalorder %s30, 0
      %p177 = por %p175, %p176
      %p178 = scmp.ne.s32.totalorder %s166, %s167
      %p179 = scmp.eq.s32.totalorder %s31, 9
      %p180 = por %p178, %p179
      %p182 = scmp.ne.s32.totalorder %s167, %s181
      %p183 = scmp.eq.s32.totalorder %s31, 0
      %p184 = por %p182, %p183
      %p185 = scmp.le.s32.totalorder 1, %s25
      %p186 = scmp.lt.s32.totalorder %s25, 11
      %p187 = pnand %p185, %p186
      %p188 = pneg %p187
      // Predicated region
      $region9: #{_forward.5} parent=5 // pred_check
        _
      $region10: #{_forward.5} parent=5 // pred_check_branch
        %190 = sbr.rel (%p187) target = $region12
      $region11: #{_forward.5} parent=5 // pred_region
        %s191 = ssub.s32 %s25, 1
        // Predicated region
        $region13: #{_forward.5} parent=11 // pred_check
          %p192 = pneg %p58
        $region14: #{_forward.5} parent=11 // pred_check_branch
          %194 = sbr.rel (%p192) target = $region16
        $region15: #{_forward.5} parent=11 // pred_region
          _
        $region16: #{_forward.5} parent=11 // pred_fallthru
          _
        // Predicated region
        $region17: #{_forward.5} parent=11 // pred_check
          %p195 = pneg %p79
        $region18: #{_forward.5} parent=11 // pred_check_branch
          %197 = sbr.rel (%p195) target = $region20
        $region19: #{_forward.5} parent=11 // pred_region
          _
        $region20: #{_forward.5} parent=11 // pred_fallthru
          _
        // Predicated region
        $region21: #{_forward.5} parent=11 // pred_check
          %p198 = pneg %p100
        $region22: #{_forward.5} parent=11 // pred_check_branch
          %200 = sbr.rel (%p198) target = $region24
        $region23: #{_forward.5} parent=11 // pred_region
          _
        $region24: #{_forward.5} parent=11 // pred_fallthru
          _
      $region12: #{_forward.5} parent=5 // pred_fallthru
        _
      %p201 = scmp.lt.s32.totalorder %s25, 10
      // Predicated region
      $region25: #{_forward.5} parent=5 // pred_check
        %p202 = pneg %p201
      $region26: #{_forward.5} parent=5 // pred_check_branch
        %204 = sbr.rel (%p202) target = $region28
      $region27: #{_forward.5} parent=5 // pred_region
        // Predicated region
        $region29: #{_forward.5} parent=27 // pred_check
          %p205 = pneg %p122
        $region30: #{_forward.5} parent=27 // pred_check_branch
          %207 = sbr.rel (%p205) target = $region32
        $region31: #{_forward.5} parent=27 // pred_region
          %s208 = sand.u32 %s112, 1
          %s209 = scalar_lea.sflag [#allocation6], %s208
          %s210 = sand.u32 %s112, 1
          %s211 = smul.addr %s210, 128
          %s212 = scalar_lea.vmem [#allocation5], %s211
          %s214 = ssub.s32 2048, 2048
          %215 = vsyncadd %s209, %s214
          %s216 = smul.addr %s32, 64
          %s217 = sadd.s32 %s33, %s216
          %s218 = smul.addr %s217, 64
          %s219 = scalar_lea.hbm %s4, %s218
          %s220 = sshll.u32 %s212, 4
          %s221 = int_to_ptr.vmem [resolvable:$true] %s220
          %226 = dma.hbm_to_vmem [thread:$0]  %s219, 2048, %s221, %s209, 128, 64, 4
        $region32: #{_forward.5} parent=27 // pred_fallthru
          _
        // Predicated region
        $region33: #{_forward.5} parent=27 // pred_check
          %p227 = pneg %p150
        $region34: #{_forward.5} parent=27 // pred_check_branch
          %229 = sbr.rel (%p227) target = $region36
        $region35: #{_forward.5} parent=27 // pred_region
          %s230 = sand.u32 %s140, 1
          %s231 = scalar_lea.sflag [#allocation9], %s230
          %s232 = sand.u32 %s140, 1
          %s233 = smul.addr %s232, 64
          %s234 = scalar_lea.vmem [#allocation8], %s233
          %s235 = smul.u32 16, %s33
          %s237 = ssub.s32 1024, 1024
          %238 = vsyncadd %s231, %s237
          %s239 = smul.addr %s32, 32
          %s240 = sadd.s32 %s235, %s239
          %s241 = smul.addr %s240, 64
          %s242 = scalar_lea.hbm %s5, %s241
          %s243 = sshll.u32 %s234, 4
          %s244 = int_to_ptr.vmem [resolvable:$true] %s243
          %249 = dma.hbm_to_vmem [thread:$0]  %s242, 1024, %s244, %s231, 64, 64, 4
        $region36: #{_forward.5} parent=27 // pred_fallthru
          _
      $region28: #{_forward.5} parent=5 // pred_fallthru
        _
      %p250 = scmp.le.s32.totalorder 1, %s25
      %p251 = scmp.lt.s32.totalorder %s25, 11
      %p252 = pnand %p250, %p251
      %p253 = pneg %p252
      // Predicated region
      $region37: #{_forward.5} parent=5 // pred_check
        _
      $region38: #{_forward.5} parent=5 // pred_check_branch
        %255 = sbr.rel (%p252) target = $region40
      $region39: #{_forward.5} parent=5 // pred_region
        %s256 = ssub.s32 %s25, 1
        %s257 = sand.u32 %s115, 1
        %s258 = scalar_lea.sflag [#allocation6], %s257
        %s259 = sand.u32 %s115, 1
        %s260 = smul.addr %s259, 128
        %s261 = scalar_lea.vmem [#allocation5], %s260
        // Predicated region
        $region41: #{_forward.5} parent=39 // pred_check
          %p262 = pneg %p128
        $region42: #{_forward.5} parent=39 // pred_check_branch
          %264 = sbr.rel (%p262) target = $region44
        $region43: #{_forward.5} parent=39 // pred_region
          %265 = dma.done %s258, 2048
        $region44: #{_forward.5} parent=39 // pred_fallthru
          _
        %s266 = sand.u32 %s143, 1
        %s267 = scalar_lea.sflag [#allocation9], %s266
        %s268 = sand.u32 %s143, 1
        %s269 = smul.addr %s268, 64
        %s270 = scalar_lea.vmem [#allocation8], %s269
        // Predicated region
        $region45: #{_forward.5} parent=39 // pred_check
          %p271 = pneg %p156
        $region46: #{_forward.5} parent=39 // pred_check_branch
          %273 = sbr.rel (%p271) target = $region48
        $region47: #{_forward.5} parent=39 // pred_region
          %274 = dma.done %s267, 1024
        $region48: #{_forward.5} parent=39 // pred_fallthru
          _
        %p275 = pneg %p58
        %p276 = pneg %p55
        %p277 = pneg %p79
        %p278 = pneg %p76
        %p279 = pneg %p100
        %p280 = pneg %p97
        %s281 = sand.u32 %s115, 1
        %s282 = scalar_lea.sflag [#allocation6], %s281
        %s283 = sand.u32 %s115, 1
        %s284 = smul.addr %s283, 128
        %s285 = scalar_lea.vmem [#allocation5], %s284
        %p286 = pneg %p128
        %p287 = pneg %p125
        %s288 = sand.u32 %s143, 1
        %s289 = scalar_lea.sflag [#allocation9], %s288
        %s290 = sand.u32 %s143, 1
        %s291 = smul.addr %s290, 64
        %s292 = scalar_lea.vmem [#allocation8], %s291
        %p293 = pneg %p156
        %p294 = pneg %p153
        %p295 = pneg %p177
        %p296 = pneg %p174
        %s297 = smul.u32 16, %s35
        %p299 = scmp.eq.s32.totalorder %s34, 0
        %p300 = scmp.eq.s32.totalorder %s35, 0
        %p301 = pnand %p299, %p300
        %p302 = pneg %p301
        // Predicated region
        $region49: #{_forward.5} parent=39 // pred_check
          _
        $region50: #{_forward.5} parent=39 // pred_check_branch
          %304 = sbr.rel (%p301) target = $region52
        $region51: #{_forward.5} parent=39 // pred_region
          %v305 = vld [vmem:[%s1] sm:$0xff]
          %v306 = vld [vmem:[%s1 + $0x8] sm:$0xff]
          %307 = vst [vmem:[#allocation2] sm:$0xff] %v305
          %308 = vst [vmem:[#allocation2 + $0x8] sm:$0xff] %v306
        $region52: #{_forward.5} parent=39 // pred_fallthru
          _
        %s309 = sld [smem:[#allocation4 + %s34]]
        %p310 = scmp.gt.s32.totalorder %s309, 0
        // Predicated region
        $region53: #{_forward.5} parent=39 // pred_check
          %p311 = pneg %p310
        $region54: #{_forward.5} parent=39 // pred_check_branch
          %313 = sbr.rel (%p311) target = $region56
        $region55: #{_forward.5} parent=39 // pred_region
          %v314 = vld [vmem:[%s3] sm:$0xff]
          %v315 = vld [vmem:[%s3 + $0x8] sm:$0xff]
          %v316 = vlaneseq
          %v317 = vand.u32 %v316, 127
          %v318 = vstv %s34
          %vm319 = vcmp.eq.s32.totalorder %v317, %v318
          %v320 = vsel %vm319, %v314, 0.0
          %v321 = vsel %vm319, %v315, 0.0
          %vm322 = vcmask 39936
          %v323 = vsel %vm322, %v320, 0.0
          %324 = vadd.xlane.f32.xlu0 %v323
          %v325 = vpop.xlane.xlu0 %324
          %v326 = vsel %vm322, %v321, 0.0
          %327 = vadd.xlane.f32.xlu0 %v326
          %v328 = vpop.xlane.xlu0 %327
          %v329 = vld [vmem:[%s2] sm:$0xf]
          %v330 = vld [vmem:[%s2 + $0x4] sm:$0xf]
          %v331 = vunpack.c.l.bf16 %v329
          %v332 = vunpack.c.l.bf16 %v330
          %v333 = vmul.f32 %v331, %v325
          %v334 = vmul.f32 %v332, %v328
          %v335 = vpack.c.bf16 %v334, %v333
          %v336 = vld [vmem:[%s261] sm:$0xf]
          %v337 = vld [vmem:[%s261 + $0x4] sm:$0xf]
          %v338 = vld [vmem:[%s261 + $0x8] sm:$0xf]
          %v339 = vld [vmem:[%s261 + $0xc] sm:$0xf]
          %v340 = vld [vmem:[%s261 + $0x10] sm:$0xf]
          %v341 = vld [vmem:[%s261 + $0x14] sm:$0xf]
          %v342 = vld [vmem:[%s261 + $0x18] sm:$0xf]
          %v343 = vld [vmem:[%s261 + $0x1c] sm:$0xf]
          %v344 = vld [vmem:[%s261 + $0x20] sm:$0xf]
          %v345 = vld [vmem:[%s261 + $0x24] sm:$0xf]
          %v346 = vld [vmem:[%s261 + $0x28] sm:$0xf]
          %v347 = vld [vmem:[%s261 + $0x2c] sm:$0xf]
          %v348 = vld [vmem:[%s261 + $0x30] sm:$0xf]
          %v349 = vld [vmem:[%s261 + $0x34] sm:$0xf]
          %v350 = vld [vmem:[%s261 + $0x38] sm:$0xf]
          %v351 = vld [vmem:[%s261 + $0x3c] sm:$0xf]
          %v368 = vunpack.c.l.b16 %v336
          %v369 = vunpack.c.l.b16 %v337
          %v370 = vunpack.c.l.b16 %v338
          %v371 = vunpack.c.l.b16 %v339
          %v372 = vunpack.c.l.b16 %v340
          %v373 = vunpack.c.l.b16 %v341
          %v374 = vunpack.c.l.b16 %v342
          %v375 = vunpack.c.l.b16 %v343
          %v376 = vunpack.c.l.b16 %v344
          %v377 = vunpack.c.l.b16 %v345
          %v378 = vunpack.c.l.b16 %v346
          %v379 = vunpack.c.l.b16 %v347
          %v380 = vunpack.c.l.b16 %v348
          %v381 = vunpack.c.l.b16 %v349
          %v382 = vunpack.c.l.b16 %v350
          %v383 = vunpack.c.l.b16 %v351
          %v384 = vpack.c.b16 %v369, %v368
          %v385 = vpack.c.b16 %v371, %v370
          %v386 = vpack.c.b16 %v373, %v372
          %v387 = vpack.c.b16 %v375, %v374
          %v388 = vpack.c.b16 %v377, %v376
          %v389 = vpack.c.b16 %v379, %v378
          %v390 = vpack.c.b16 %v381, %v380
          %v391 = vpack.c.b16 %v383, %v382
          %400 = vmatprep.subr.bf16.mxu0 0
          %401 = vmatpush1.bf16.msra.mxu0 %v391
          %402 = vmatprep.subr.bf16.mxu0 0
          %403 = vmatpush1.bf16.msra.mxu0 %v390
          %404 = vmatprep.subr.bf16.mxu0 0
          %405 = vmatpush1.bf16.msra.mxu0 %v389
          %406 = vmatprep.subr.bf16.mxu0 0
          %407 = vmatpush1.bf16.msra.mxu0 %v388
          %408 = vmatprep.subr.bf16.mxu0 0
          %409 = vmatpush1.bf16.msra.mxu0 %v387
          %410 = vmatprep.subr.bf16.mxu0 0
          %411 = vmatpush1.bf16.msra.mxu0 %v386
          %412 = vmatprep.subr.bf16.mxu0 0
          %413 = vmatpush1.bf16.msra.mxu0 %v385
          %414 = vmatprep.subr.bf16.mxu0 0
          %415 = vmatpush1.bf16.msra.mxu0 %v384
          %416 = vmatprep.subr.bf16.mxu0 0
          %417 = vmatpush2.bf16.msra.mxu0 0
          %418 = vmatprep.subr.bf16.mxu0 0
          %419 = vmatpush2.bf16.msra.mxu0 0
          %420 = vmatprep.subr.bf16.mxu0 0
          %421 = vmatpush2.bf16.msra.mxu0 0
          %422 = vmatprep.subr.bf16.mxu0 0
          %423 = vmatpush2.bf16.msra.mxu0 0
          %424 = vmatprep.subr.bf16.mxu0 0
          %425 = vmatpush2.bf16.msra.mxu0 0
          %426 = vmatprep.subr.bf16.mxu0 0
          %427 = vmatpush2.bf16.msra.mxu0 0
          %428 = vmatprep.subr.bf16.mxu0 0
          %429 = vmatpush2.bf16.msra.mxu0 0
          %430 = vmatprep.subr.bf16.mxu0 0
          %431 = vmatpush2.bf16.msra.mxu0 0
          %432 = vmatprep.mubr.bf16.mxu0 0
          %433 = vmatmul.mubr.bf16.gmra.mxu0 %v335
          %v434 = vpop.f32.mrf.mxu0
          %v435 = vadd.f32 0.0, %v434
          %v436 = vpop.f32.mrf.mxu0
          %v437 = vpop.f32.mrf.mxu0
          %v438 = vadd.f32 0.0, %v437
          %v439 = vpop.f32.mrf.mxu0
          %440 = vdwg.mxu0
          %s441 = scalar_lea.vmem %s261, 64 [#allocation5]
          %v442 = vld [vmem:[%s441] sm:$0xf]
          %v443 = vld [vmem:[%s441 + $0x4] sm:$0xf]
          %v444 = vld [vmem:[%s441 + $0x8] sm:$0xf]
          %v445 = vld [vmem:[%s441 + $0xc] sm:$0xf]
          %v446 = vld [vmem:[%s441 + $0x10] sm:$0xf]
          %v447 = vld [vmem:[%s441 + $0x14] sm:$0xf]
          %v448 = vld [vmem:[%s441 + $0x18] sm:$0xf]
          %v449 = vld [vmem:[%s441 + $0x1c] sm:$0xf]
          %v450 = vld [vmem:[%s441 + $0x20] sm:$0xf]
          %v451 = vld [vmem:[%s441 + $0x24] sm:$0xf]
          %v452 = vld [vmem:[%s441 + $0x28] sm:$0xf]
          %v453 = vld [vmem:[%s441 + $0x2c] sm:$0xf]
          %v454 = vld [vmem:[%s441 + $0x30] sm:$0xf]
          %v455 = vld [vmem:[%s441 + $0x34] sm:$0xf]
          %v456 = vld [vmem:[%s441 + $0x38] sm:$0xf]
          %v457 = vld [vmem:[%s441 + $0x3c] sm:$0xf]
          %v474 = vunpack.c.l.b16 %v442
          %v475 = vunpack.c.l.b16 %v443
          %v476 = vunpack.c.l.b16 %v444
          %v477 = vunpack.c.l.b16 %v445
          %v478 = vunpack.c.l.b16 %v446
          %v479 = vunpack.c.l.b16 %v447
          %v480 = vunpack.c.l.b16 %v448
          %v481 = vunpack.c.l.b16 %v449
          %v482 = vunpack.c.l.b16 %v450
          %v483 = vunpack.c.l.b16 %v451
          %v484 = vunpack.c.l.b16 %v452
          %v485 = vunpack.c.l.b16 %v453
          %v486 = vunpack.c.l.b16 %v454
          %v487 = vunpack.c.l.b16 %v455
          %v488 = vunpack.c.l.b16 %v456
          %v489 = vunpack.c.l.b16 %v457
          %v490 = vpack.c.b16 %v475, %v474
          %v491 = vpack.c.b16 %v477, %v476
          %v492 = vpack.c.b16 %v479, %v478
          %v493 = vpack.c.b16 %v481, %v480
          %v494 = vpack.c.b16 %v483, %v482
          %v495 = vpack.c.b16 %v485, %v484
          %v496 = vpack.c.b16 %v487, %v486
          %v497 = vpack.c.b16 %v489, %v488
          %506 = vmatprep.subr.bf16.mxu0 0
          %507 = vmatpush1.bf16.msra.mxu0 %v497
          %508 = vmatprep.subr.bf16.mxu0 0
          %509 = vmatpush1.bf16.msra.mxu0 %v496
          %510 = vmatprep.subr.bf16.mxu0 0
          %511 = vmatpush1.bf16.msra.mxu0 %v495
          %512 = vmatprep.subr.bf16.mxu0 0
          %513 = vmatpush1.bf16.msra.mxu0 %v494
          %514 = vmatprep.subr.bf16.mxu0 0
          %515 = vmatpush1.bf16.msra.mxu0 %v493
          %516 = vmatprep.subr.bf16.mxu0 0
          %517 = vmatpush1.bf16.msra.mxu0 %v492
          %518 = vmatprep.subr.bf16.mxu0 0
          %519 = vmatpush1.bf16.msra.mxu0 %v491
          %520 = vmatprep.subr.bf16.mxu0 0
          %521 = vmatpush1.bf16.msra.mxu0 %v490
          %522 = vmatprep.subr.bf16.mxu0 0
          %523 = vmatpush2.bf16.msra.mxu0 0
          %524 = vmatprep.subr.bf16.mxu0 0
          %525 = vmatpush2.bf16.msra.mxu0 0
          %526 = vmatprep.subr.bf16.mxu0 0
          %527 = vmatpush2.bf16.msra.mxu0 0
          %528 = vmatprep.subr.bf16.mxu0 0
          %529 = vmatpush2.bf16.msra.mxu0 0
          %530 = vmatprep.subr.bf16.mxu0 0
          %531 = vmatpush2.bf16.msra.mxu0 0
          %532 = vmatprep.subr.bf16.mxu0 0
          %533 = vmatpush2.bf16.msra.mxu0 0
          %534 = vmatprep.subr.bf16.mxu0 0
          %535 = vmatpush2.bf16.msra.mxu0 0
          %536 = vmatprep.subr.bf16.mxu0 0
          %537 = vmatpush2.bf16.msra.mxu0 0
          %538 = vmatprep.mubr.bf16.mxu0 0
          %539 = vmatmul.mubr.bf16.gmra.mxu0 %v335
          %v540 = vpop.f32.mrf.mxu0
          %v541 = vadd.f32 0.0, %v540
          %v542 = vpop.f32.mrf.mxu0
          %v543 = vpop.f32.mrf.mxu0
          %v544 = vadd.f32 0.0, %v543
          %v545 = vpop.f32.mrf.mxu0
          %546 = vdwg.mxu0
          %v547 = vxor.u32 %v435, 2147483648
          %v548 = vxor.u32 %v438, 2147483648
          %v549 = vmul.f32 %v547, 1.442695
          %v550 = vpow.pop %v549
          %v551 = vmul.f32 %v548, 1.442695
          %v552 = vpow.pop %v551
          %v553 = vadd.f32 %v550, 1.0
          %v554 = vadd.f32 %v552, 1.0
          %v555 = vrcp.pop %v553
          %v556 = vmul.f32 1.0, %v555
          %v557 = vrcp.pop %v554
          %v558 = vmul.f32 1.0, %v557
          %v559 = vmul.f32 %v435, %v556
          %v560 = vmul.f32 %v438, %v558
          %v561 = vmul.f32 %v559, %v541
          %v562 = vmul.f32 %v560, %v544
          %v563 = vpack.c.bf16 %v562, %v561
          %v564 = vld [vmem:[#allocation2] sm:$0xff]
          %v565 = vld [vmem:[#allocation2 + $0x8] sm:$0xff]
          %v566 = vld [vmem:[%s270] sm:$0xf]
          %v567 = vld [vmem:[%s270 + $0x4] sm:$0xf]
          %v568 = vld [vmem:[%s270 + $0x8] sm:$0xf]
          %v569 = vld [vmem:[%s270 + $0xc] sm:$0xf]
          %v570 = vld [vmem:[%s270 + $0x10] sm:$0xf]
          %v571 = vld [vmem:[%s270 + $0x14] sm:$0xf]
          %v572 = vld [vmem:[%s270 + $0x18] sm:$0xf]
          %v573 = vld [vmem:[%s270 + $0x1c] sm:$0xf]
          %v574 = vld [vmem:[%s270 + $0x20] sm:$0xf]
          %v575 = vld [vmem:[%s270 + $0x24] sm:$0xf]
          %v576 = vld [vmem:[%s270 + $0x28] sm:$0xf]
          %v577 = vld [vmem:[%s270 + $0x2c] sm:$0xf]
          %v578 = vld [vmem:[%s270 + $0x30] sm:$0xf]
          %v579 = vld [vmem:[%s270 + $0x34] sm:$0xf]
          %v580 = vld [vmem:[%s270 + $0x38] sm:$0xf]
          %v581 = vld [vmem:[%s270 + $0x3c] sm:$0xf]
          %v598 = vunpack.c.l.b16 %v566
          %v599 = vunpack.c.l.b16 %v567
          %v600 = vunpack.c.l.b16 %v568
          %v601 = vunpack.c.l.b16 %v569
          %v602 = vunpack.c.l.b16 %v570
          %v603 = vunpack.c.l.b16 %v571
          %v604 = vunpack.c.l.b16 %v572
          %v605 = vunpack.c.l.b16 %v573
          %v606 = vunpack.c.l.b16 %v574
          %v607 = vunpack.c.l.b16 %v575
          %v608 = vunpack.c.l.b16 %v576
          %v609 = vunpack.c.l.b16 %v577
          %v610 = vunpack.c.l.b16 %v578
          %v611 = vunpack.c.l.b16 %v579
          %v612 = vunpack.c.l.b16 %v580
          %v613 = vunpack.c.l.b16 %v581
          %v614 = vpack.c.b16 %v599, %v598
          %v615 = vpack.c.b16 %v601, %v600
          %v616 = vpack.c.b16 %v603, %v602
          %v617 = vpack.c.b16 %v605, %v604
          %v618 = vpack.c.b16 %v607, %v606
          %v619 = vpack.c.b16 %v609, %v608
          %v620 = vpack.c.b16 %v611, %v610
          %v621 = vpack.c.b16 %v613, %v612
          %630 = vmatprep.subr.bf16.mxu0 0
          %631 = vmatpush1.bf16.msra.mxu0 %v621
          %632 = vmatprep.subr.bf16.mxu0 0
          %633 = vmatpush1.bf16.msra.mxu0 %v620
          %634 = vmatprep.subr.bf16.mxu0 0
          %635 = vmatpush1.bf16.msra.mxu0 %v619
          %636 = vmatprep.subr.bf16.mxu0 0
          %637 = vmatpush1.bf16.msra.mxu0 %v618
          %638 = vmatprep.subr.bf16.mxu0 0
          %639 = vmatpush1.bf16.msra.mxu0 %v617
          %640 = vmatprep.subr.bf16.mxu0 0
          %641 = vmatpush1.bf16.msra.mxu0 %v616
          %642 = vmatprep.subr.bf16.mxu0 0
          %643 = vmatpush1.bf16.msra.mxu0 %v615
          %644 = vmatprep.subr.bf16.mxu0 0
          %645 = vmatpush1.bf16.msra.mxu0 %v614
          %646 = vmatprep.subr.bf16.mxu0 0
          %647 = vmatpush2.bf16.msra.mxu0 0
          %648 = vmatprep.subr.bf16.mxu0 0
          %649 = vmatpush2.bf16.msra.mxu0 0
          %650 = vmatprep.subr.bf16.mxu0 0
          %651 = vmatpush2.bf16.msra.mxu0 0
          %652 = vmatprep.subr.bf16.mxu0 0
          %653 = vmatpush2.bf16.msra.mxu0 0
          %654 = vmatprep.subr.bf16.mxu0 0
          %655 = vmatpush2.bf16.msra.mxu0 0
          %656 = vmatprep.subr.bf16.mxu0 0
          %657 = vmatpush2.bf16.msra.mxu0 0
          %658 = vmatprep.subr.bf16.mxu0 0
          %659 = vmatpush2.bf16.msra.mxu0 0
          %660 = vmatprep.subr.bf16.mxu0 0
          %661 = vmatpush2.bf16.msra.mxu0 0
          %662 = vmatprep.mubr.bf16.mxu0 0
          %663 = vmatmul.mubr.bf16.gmra.mxu0 %v563
          %v664 = vpop.f32.mrf.mxu0
          %v665 = vadd.f32 0.0, %v664
          %v666 = vpop.f32.mrf.mxu0
          %v667 = vpop.f32.mrf.mxu0
          %v668 = vadd.f32 0.0, %v667
          %v669 = vpop.f32.mrf.mxu0
          %670 = vdwg.mxu0
          %v671 = vadd.f32 %v564, %v665
          %v672 = vadd.f32 %v565, %v668
          %673 = vst [vmem:[#allocation2] sm:$0xff] %v671
          %674 = vst [vmem:[#allocation2 + $0x8] sm:$0xff] %v672
        $region56: #{_forward.5} parent=39 // pred_fallthru
          _
        %p675 = scmp.eq.s32.totalorder %s34, 4
        %p676 = scmp.eq.s32.totalorder %s35, 1
        %p677 = pnand %p675, %p676
        %p678 = pneg %p677
        // Predicated region
        $region57: #{_forward.5} parent=39 // pred_check
          _
        $region58: #{_forward.5} parent=39 // pred_check_branch
          %680 = sbr.rel (%p677) target = $region60
        $region59: #{_forward.5} parent=39 // pred_region
          %v681 = vld [vmem:[#allocation2] sm:$0xff]
          %v682 = vld [vmem:[#allocation2 + $0x8] sm:$0xff]
          %683 = vst [vmem:[#allocation10] sm:$0xff] %v681
          %684 = vst [vmem:[#allocation10 + $0x8] sm:$0xff] %v682
        $region60: #{_forward.5} parent=39 // pred_fallthru
          _
        // Predicated region
        $region61: #{_forward.5} parent=39 // pred_check
          %p685 = pneg %p174
        $region62: #{_forward.5} parent=39 // pred_check_branch
          %687 = sbr.rel (%p685) target = $region64
        $region63: #{_forward.5} parent=39 // pred_region
          %s689 = ssub.s32 256, 256
          %690 = vsyncadd [#allocation7], %s689
          %s691 = sshll.u32 [#allocation10], 4
          %s692 = int_to_ptr.vmem [resolvable:$true] %s691
          %697 = dma.vmem_to_hbm [thread:$0]  %s692, 256, %s6, [#allocation7], 128, 128, 8
        $region64: #{_forward.5} parent=39 // pred_fallthru
          _
        // Predicated region
        $region65: #{_forward.5} parent=39 // pred_check
          %p698 = pneg %p174
        $region66: #{_forward.5} parent=39 // pred_check_branch
          %700 = sbr.rel (%p698) target = $region68
        $region67: #{_forward.5} parent=39 // pred_region
          %701 = dma.done [#allocation7], 256
        $region68: #{_forward.5} parent=39 // pred_fallthru
          _
      $region40: #{_forward.5} parent=5 // pred_fallthru
        _
      %p702 = scmp.le.s32.totalorder 2, %s25
      // Predicated region
      $region69: #{_forward.5} parent=5 // pred_check
        %p703 = pneg %p702
      $region70: #{_forward.5} parent=5 // pred_check_branch
        %705 = sbr.rel (%p703) target = $region72
      $region71: #{_forward.5} parent=5 // pred_region
        %s706 = ssub.s32 %s25, 2
      $region72: #{_forward.5} parent=5 // pred_fallthru
        _
    $region6: #{_forward.5} parent=1 // loop_footer
      %s29 = sadd.s32 1, %s25
    $region7: #{_forward.5} parent=1 // loop_footer_branch
      %24 = sbr.rel target = $region3
    $region8: #{_forward.5} parent=1 // loop_exit
      _
    %707 = vsyncpa [#allocation6], 1
    %s708 = scalar_lea.sflag [#allocation6], 1
    %709 = vsyncpa %s708, 1
    %710 = vsyncpa [#allocation9], 1
    %s711 = scalar_lea.sflag [#allocation9], 1
    %712 = vsyncpa %s711, 1
    %713 = vsyncpa [#allocation7], 1
    %s714 = scalar_lea.sflag [#allocation7], 1
    %715 = vsyncpa %s714, 1

// kernel: _forward.3
$region0: #{_forward.3}
  #allocation0 [shape = 'u32[]', space=smem, size = 0x4, offset = 0x4, fixed_abs, tag = 'smem constant byte address 0x4 - core index']
  #allocation1 [shape = 'u32[144,128]{1,0:T(1,128)}', space=vmem, size = 0x12000, scoped, tag = 'internal scratch']
  #allocation2 [shape = 'bf16[16,128]{1,0:T(8,128)(2,1)}', space=vmem, size = 0x1000, scoped, tag = 'scratch operand']
  #allocation3 [shape = 'f32[16,128]{1,0:T(8,128)}', space=vmem, size = 0x2000, scoped, tag = 'scratch operand']
  %s0 = inlined_call_operand.vmem [shape: f32[16,128], index: 0, kind: input, shape index: {}]
  %s1 = inlined_call_operand.vmem [shape: f32[1,128], index: 1, kind: input, shape index: {}]
  %s2 = inlined_call_operand.vmem [shape: f32[16,16], index: 2, kind: input, shape index: {}]
  %s3 = inlined_call_operand.vmem [shape: f32[16,16], index: 3, kind: input, shape index: {}]
  %s4 = inlined_call_operand.hbm [shape: bf16[2,128,128], index: 4, kind: input, shape index: {}]
  %s5 = inlined_call_operand.vmem [shape: bf16[2,64,128], index: 5, kind: input, shape index: {}]
  %s6 = inlined_call_operand.vmem [shape: f32[16,128], index: 6, kind: output, shape index: {}]
  %s7 = sld [smem:[#allocation0]]
  $region69: #{_forward.3} parent=0
    _
  %s9 = ssub.s32 1, %s7
  %s10 = scalar_select 0, %s9, %s7
  $region1: #{_forward.3} parent=0
    #allocation4 [shape = 'u8[65536]{0}', space=vmem, size = 0x10000, scoped, tag = 'input window, operand 4']
    #allocation5 [shape = 's32[2]{0}', space=sflag, size = 0x8, scoped, tag = 'scoped memory for _forward.3']
    %11 = vsyncpa [#allocation5], 0
    %s12 = scalar_lea.sflag [#allocation5], 1
    %13 = vsyncpa %s12, 0
    loop: start=0, step=1, limit=4
    $region2: #{_forward.3} parent=1 // loop_pre_header
      _
    $region3: #{_forward.3} parent=1 // loop_header
      %s15 = sphi 0, %s19
      %p16 = scmp.ge.s32.totalorder %s15, 4
      %s23 = sphi 0, %s23
      %s25 = sphi 0, %s23
      %s26 = sphi 0, %s25
      %s40 = sphi 0, %s26
      %s44 = sphi 0, %s44
      %s46 = sphi 0, %s44
      %s47 = sphi 0, %s46
      %s61 = sphi 0, %s47
      %s65 = sphi 0, %s65
      %s67 = sphi 0, %s65
      %s68 = sphi 0, %s67
      %s82 = sphi 0, %s68
      %s86 = sphi 0, %s86
      %s88 = sphi 0, %s86
      %s89 = sphi 0, %s88
      %s103 = sphi 0, %s89
      %s109 = sphi 0, %s111
      %s112 = sphi 0, %s109
      %s113 = sphi 0, %s112
      %s129 = sphi 0, %s113
      %s135 = sphi 0, %s137
      %s138 = sphi 0, %s135
      %s139 = sphi 0, %s138
      %s155 = sphi 0, %s139
      %s159 = sphi 0, %s159
      %s161 = sphi 0, %s159
      %s162 = sphi 0, %s161
      %s176 = sphi 0, %s162
    $region4: #{_forward.3} parent=1 // loop_header_branch
      %18 = sbr.rel (%p16) target = $region8
    $region5: #{_forward.3} parent=1 // loop_body
      %s20 = ssub.s32 %s15, 1
      %s21 = ssub.s32 %s15, 2
      %s22 = sadd.s32 %s15, 1
      %s24 = sadd.s32 %s23, 1
      %p27 = scmp.eq.s32.totalorder %s15, 1
      %p28 = scmp.ne.s32.totalorder %s23, %s25
      %p29 = scmp.eq.s32.totalorder %s15, 0
      %p30 = por %p28, %p29
      %p31 = scmp.ne.s32.totalorder %s23, %s25
      %p32 = scmp.eq.s32.totalorder %s20, 1
      %p33 = por %p31, %p32
      %p34 = scmp.ne.s32.totalorder %s25, %s26
      %p35 = scmp.eq.s32.totalorder %s20, 0
      %p36 = por %p34, %p35
      %p37 = scmp.ne.s32.totalorder %s25, %s26
      %p38 = scmp.eq.s32.totalorder %s21, 1
      %p39 = por %p37, %p38
      %p41 = scmp.ne.s32.totalorder %s26, %s40
      %p42 = scmp.eq.s32.totalorder %s21, 0
      %p43 = por %p41, %p42
      %s45 = sadd.s32 %s44, 1
      %p48 = scmp.eq.s32.totalorder %s15, 1
      %p49 = scmp.ne.s32.totalorder %s44, %s46
      %p50 = scmp.eq.s32.totalorder %s15, 0
      %p51 = por %p49, %p50
      %p52 = scmp.ne.s32.totalorder %s44, %s46
      %p53 = scmp.eq.s32.totalorder %s20, 1
      %p54 = por %p52, %p53
      %p55 = scmp.ne.s32.totalorder %s46, %s47
      %p56 = scmp.eq.s32.totalorder %s20, 0
      %p57 = por %p55, %p56
      %p58 = scmp.ne.s32.totalorder %s46, %s47
      %p59 = scmp.eq.s32.totalorder %s21, 1
      %p60 = por %p58, %p59
      %p62 = scmp.ne.s32.totalorder %s47, %s61
      %p63 = scmp.eq.s32.totalorder %s21, 0
      %p64 = por %p62, %p63
      %s66 = sadd.s32 %s65, 1
      %p69 = scmp.eq.s32.totalorder %s15, 1
      %p70 = scmp.ne.s32.totalorder %s65, %s67
      %p71 = scmp.eq.s32.totalorder %s15, 0
      %p72 = por %p70, %p71
      %p73 = scmp.ne.s32.totalorder %s65, %s67
      %p74 = scmp.eq.s32.totalorder %s20, 1
      %p75 = por %p73, %p74
      %p76 = scmp.ne.s32.totalorder %s67, %s68
      %p77 = scmp.eq.s32.totalorder %s20, 0
      %p78 = por %p76, %p77
      %p79 = scmp.ne.s32.totalorder %s67, %s68
      %p80 = scmp.eq.s32.totalorder %s21, 1
      %p81 = por %p79, %p80
      %p83 = scmp.ne.s32.totalorder %s68, %s82
      %p84 = scmp.eq.s32.totalorder %s21, 0
      %p85 = por %p83, %p84
      %s87 = sadd.s32 %s86, 1
      %p90 = scmp.eq.s32.totalorder %s15, 1
      %p91 = scmp.ne.s32.totalorder %s86, %s88
      %p92 = scmp.eq.s32.totalorder %s15, 0
      %p93 = por %p91, %p92
      %p94 = scmp.ne.s32.totalorder %s86, %s88
      %p95 = scmp.eq.s32.totalorder %s20, 1
      %p96 = por %p94, %p95
      %p97 = scmp.ne.s32.totalorder %s88, %s89
      %p98 = scmp.eq.s32.totalorder %s20, 0
      %p99 = por %p97, %p98
      %p100 = scmp.ne.s32.totalorder %s88, %s89
      %p101 = scmp.eq.s32.totalorder %s21, 1
      %p102 = por %p100, %p101
      %p104 = scmp.ne.s32.totalorder %s89, %s103
      %p105 = scmp.eq.s32.totalorder %s21, 0
      %p106 = por %p104, %p105
      %s107 = ssub.s32 %s15, %s22
      %p108 = scmp.eq.s32.totalorder %s107, 0
      %s110 = sadd.s32 %s109, 1
      %s111 = scalar_select %p108, %s109, %s110
      %p114 = pneg %p108
      %p115 = scmp.eq.s32.totalorder %s15, 1
      %p116 = por %p114, %p115
      %p117 = scmp.ne.s32.totalorder %s109, %s112
      %p118 = scmp.eq.s32.totalorder %s15, 0
      %p119 = por %p117, %p118
      %p120 = scmp.ne.s32.totalorder %s109, %s112
      %p121 = scmp.eq.s32.totalorder %s20, 1
      %p122 = por %p120, %p121
      %p123 = scmp.ne.s32.totalorder %s112, %s113
      %p124 = scmp.eq.s32.totalorder %s20, 0
      %p125 = por %p123, %p124
      %p126 = scmp.ne.s32.totalorder %s112, %s113
      %p127 = scmp.eq.s32.totalorder %s21, 1
      %p128 = por %p126, %p127
      %p130 = scmp.ne.s32.totalorder %s113, %s129
      %p131 = scmp.eq.s32.totalorder %s21, 0
      %p132 = por %p130, %p131
      %s133 = ssub.s32 %s15, %s22
      %p134 = scmp.eq.s32.totalorder %s133, 0
      %s136 = sadd.s32 %s135, 1
      %s137 = scalar_select %p134, %s135, %s136
      %p140 = pneg %p134
      %p141 = scmp.eq.s32.totalorder %s15, 1
      %p142 = por %p140, %p141
      %p143 = scmp.ne.s32.totalorder %s135, %s138
      %p144 = scmp.eq.s32.totalorder %s15, 0
      %p145 = por %p143, %p144
      %p146 = scmp.ne.s32.totalorder %s135, %s138
      %p147 = scmp.eq.s32.totalorder %s20, 1
      %p148 = por %p146, %p147
      %p149 = scmp.ne.s32.totalorder %s138, %s139
      %p150 = scmp.eq.s32.totalorder %s20, 0
      %p151 = por %p149, %p150
      %p152 = scmp.ne.s32.totalorder %s138, %s139
      %p153 = scmp.eq.s32.totalorder %s21, 1
      %p154 = por %p152, %p153
      %p156 = scmp.ne.s32.totalorder %s139, %s155
      %p157 = scmp.eq.s32.totalorder %s21, 0
      %p158 = por %p156, %p157
      %s160 = sadd.s32 %s159, 1
      %p163 = scmp.eq.s32.totalorder %s15, 1
      %p164 = scmp.ne.s32.totalorder %s159, %s161
      %p165 = scmp.eq.s32.totalorder %s15, 0
      %p166 = por %p164, %p165
      %p167 = scmp.ne.s32.totalorder %s159, %s161
      %p168 = scmp.eq.s32.totalorder %s20, 1
      %p169 = por %p167, %p168
      %p170 = scmp.ne.s32.totalorder %s161, %s162
      %p171 = scmp.eq.s32.totalorder %s20, 0
      %p172 = por %p170, %p171
      %p173 = scmp.ne.s32.totalorder %s161, %s162
      %p174 = scmp.eq.s32.totalorder %s21, 1
      %p175 = por %p173, %p174
      %p177 = scmp.ne.s32.totalorder %s162, %s176
      %p178 = scmp.eq.s32.totalorder %s21, 0
      %p179 = por %p177, %p178
      %p180 = scmp.le.s32.totalorder 1, %s15
      %p181 = scmp.lt.s32.totalorder %s15, 3
      %p182 = pnand %p180, %p181
      %p183 = pneg %p182
      // Predicated region
      $region9: #{_forward.3} parent=5 // pred_check
        _
      $region10: #{_forward.3} parent=5 // pred_check_branch
        %185 = sbr.rel (%p182) target = $region12
      $region11: #{_forward.3} parent=5 // pred_region
        %s186 = ssub.s32 %s15, 1
        // Predicated region
        $region13: #{_forward.3} parent=11 // pred_check
          %p187 = pneg %p36
        $region14: #{_forward.3} parent=11 // pred_check_branch
          %189 = sbr.rel (%p187) target = $region16
        $region15: #{_forward.3} parent=11 // pred_region
          _
        $region16: #{_forward.3} parent=11 // pred_fallthru
          _
        // Predicated region
        $region17: #{_forward.3} parent=11 // pred_check
          %p190 = pneg %p57
        $region18: #{_forward.3} parent=11 // pred_check_branch
          %192 = sbr.rel (%p190) target = $region20
        $region19: #{_forward.3} parent=11 // pred_region
          _
        $region20: #{_forward.3} parent=11 // pred_fallthru
          _
        // Predicated region
        $region21: #{_forward.3} parent=11 // pred_check
          %p193 = pneg %p78
        $region22: #{_forward.3} parent=11 // pred_check_branch
          %195 = sbr.rel (%p193) target = $region24
        $region23: #{_forward.3} parent=11 // pred_region
          _
        $region24: #{_forward.3} parent=11 // pred_fallthru
          _
        // Predicated region
        $region25: #{_forward.3} parent=11 // pred_check
          %p196 = pneg %p99
        $region26: #{_forward.3} parent=11 // pred_check_branch
          %198 = sbr.rel (%p196) target = $region28
        $region27: #{_forward.3} parent=11 // pred_region
          _
        $region28: #{_forward.3} parent=11 // pred_fallthru
          _
      $region12: #{_forward.3} parent=5 // pred_fallthru
        _
      %p199 = scmp.lt.s32.totalorder %s15, 2
      // Predicated region
      $region29: #{_forward.3} parent=5 // pred_check
        %p200 = pneg %p199
      $region30: #{_forward.3} parent=5 // pred_check_branch
        %202 = sbr.rel (%p200) target = $region32
      $region31: #{_forward.3} parent=5 // pred_region
        // Predicated region
        $region33: #{_forward.3} parent=31 // pred_check
          %p203 = pneg %p119
        $region34: #{_forward.3} parent=31 // pred_check_branch
          %205 = sbr.rel (%p203) target = $region36
        $region35: #{_forward.3} parent=31 // pred_region
          %s206 = sand.u32 %s109, 1
          %s207 = scalar_lea.sflag [#allocation5], %s206
          %s208 = sand.u32 %s109, 1
          %s209 = smul.addr %s208, 64
          %s210 = scalar_lea.vmem [#allocation4], %s209
          %s212 = ssub.s32 1024, 1024
          %213 = vsyncadd %s207, %s212
          %s214 = smul.addr %s15, 16
          %s215 = smul.addr %s214, 64
          %s216 = scalar_lea.hbm %s4, %s215
          %s217 = sshll.u32 %s210, 4
          %s218 = int_to_ptr.vmem [resolvable:$true] %s217
          %223 = dma.hbm_to_vmem [thread:$0]  %s216, 1024, %s218, %s207, 64, 64, 4
        $region36: #{_forward.3} parent=31 // pred_fallthru
          _
        // Predicated region
        $region37: #{_forward.3} parent=31 // pred_check
          %p224 = pneg %p145
        $region38: #{_forward.3} parent=31 // pred_check_branch
          %226 = sbr.rel (%p224) target = $region40
        $region39: #{_forward.3} parent=31 // pred_region
          %p227 = scmp.lt.s32.totalorder %s15, 1
          %s228 = scalar_select %p227, %s15, 1
          %s229 = smul.addr %s228, 8
          %s230 = smul.addr %s229, 4
          %s231 = scalar_lea.vmem %s5, %s230
        $region40: #{_forward.3} parent=31 // pred_fallthru
          _
      $region32: #{_forward.3} parent=5 // pred_fallthru
        _
      %p232 = scmp.le.s32.totalorder 1, %s15
      %p233 = scmp.lt.s32.totalorder %s15, 3
      %p234 = pnand %p232, %p233
      %p235 = pneg %p234
      // Predicated region
      $region41: #{_forward.3} parent=5 // pred_check
        _
      $region42: #{_forward.3} parent=5 // pred_check_branch
        %237 = sbr.rel (%p234) target = $region44
      $region43: #{_forward.3} parent=5 // pred_region
        %s238 = ssub.s32 %s15, 1
        %s239 = sand.u32 %s112, 1
        %s240 = scalar_lea.sflag [#allocation5], %s239
        %s241 = sand.u32 %s112, 1
        %s242 = smul.addr %s241, 64
        %s243 = scalar_lea.vmem [#allocation4], %s242
        // Predicated region
        $region45: #{_forward.3} parent=43 // pred_check
          %p244 = pneg %p125
        $region46: #{_forward.3} parent=43 // pred_check_branch
          %246 = sbr.rel (%p244) target = $region48
        $region47: #{_forward.3} parent=43 // pred_region
          %247 = dma.done %s240, 1024
        $region48: #{_forward.3} parent=43 // pred_fallthru
          _
        %p248 = pneg %p36
        %p249 = pneg %p33
        %p250 = pneg %p57
        %p251 = pneg %p54
        %p252 = pneg %p78
        %p253 = pneg %p75
        %p254 = pneg %p99
        %p255 = pneg %p96
        %s256 = sand.u32 %s112, 1
        %s257 = scalar_lea.sflag [#allocation5], %s256
        %s258 = sand.u32 %s112, 1
        %s259 = smul.addr %s258, 64
        %s260 = scalar_lea.vmem [#allocation4], %s259
        %p261 = pneg %p125
        %p262 = pneg %p122
        %p263 = scmp.lt.s32.totalorder %s20, 1
        %s264 = scalar_select %p263, %s20, 1
        %s265 = smul.addr %s264, 8
        %s266 = smul.addr %s265, 4
        %s267 = scalar_lea.vmem %s5, %s266
        %p268 = pneg %p151
        %p269 = pneg %p148
        %p270 = pneg %p172
        %p271 = pneg %p169
        %p272 = scmp.lt.s32.totalorder %s20, 1
        %s273 = scalar_select %p272, %s20, 1
        %s274 = smul.addr %s273, 8
        %s275 = smul.addr %s274, 4
        %s276 = scalar_lea.vmem %s5, %s275
        %p278 = scmp.eq.s32.totalorder %s20, 0
        // Predicated region
        $region49: #{_forward.3} parent=43 // pred_check
          %p279 = pneg %p278
        $region50: #{_forward.3} parent=43 // pred_check_branch
          %281 = sbr.rel (%p279) target = $region52
        $region51: #{_forward.3} parent=43 // pred_region
          %v282 = vld [vmem:[%s0] sm:$0xff]
          %v283 = vld [vmem:[%s0 + $0x8] sm:$0xff]
          %v284 = vmul.f32 %v282, %v282
          %v285 = vmul.f32 %v283, %v283
          %286 = vadd.xlane.f32.xlu0 %v284
          %v287 = vpop.xlane.xlu0 %286
          %288 = vadd.xlane.f32.xlu0 %v285
          %v289 = vpop.xlane.xlu0 %288
          %v290 = vrcp.pop 128.0
          %v291 = vmul.f32 %v287, %v290
          %v292 = vmul.f32 %v289, %v290
          %v293 = vadd.f32 %v291, 1e-05
          %v294 = vadd.f32 %v292, 1e-05
          %v295 = vrsqrt.pop %v293
          %v296 = vrsqrt.pop %v294
          %v297 = vmul.f32 %v282, %v295
          %v298 = vmul.f32 %v283, %v296
          %v299 = vld [vmem:[%s1] sm:$0x1]
          %v301 = vlaneseq
          %v302 = vshrl.u32 %v301, 7
          %v303 = vsub.s32 0, %v302
          %v304 = vrot.slane %v299, %v303
          %v306 = vmul.f32 %v297, %v304
          %v307 = vmul.f32 %v298, %v304
          %v308 = vpack.c.bf16 %v307, %v306
          %v310 = vunpack.c.l.b16 %v308
          %v311 = vunpack.c.h.b16 %v308
          %v312 = vpack.c.b16 %v310, %v310
          %v313 = vpack.c.b16 %v311, %v311
          %316 = vst [vmem:[#allocation2] sm:$0xf] %v312
          %317 = vst [vmem:[#allocation2 + $0x4] sm:$0xf] %v313
          %318 = vst [vmem:[#allocation3] sm:$0xff] %v282
          %319 = vst [vmem:[#allocation3 + $0x8] sm:$0xff] %v283
        $region52: #{_forward.3} parent=43 // pred_fallthru
          _
        %v320 = vld [vmem:[#allocation2] sm:$0xf]
        %v321 = vld [vmem:[#allocation2 + $0x4] sm:$0xf]
        %v322 = vld [vmem:[%s243] sm:$0xf]
        %v323 = vld [vmem:[%s243 + $0x4] sm:$0xf]
        %v324 = vld [vmem:[%s243 + $0x8] sm:$0xf]
        %v325 = vld [vmem:[%s243 + $0xc] sm:$0xf]
        %v326 = vld [vmem:[%s243 + $0x10] sm:$0xf]
        %v327 = vld [vmem:[%s243 + $0x14] sm:$0xf]
        %v328 = vld [vmem:[%s243 + $0x18] sm:$0xf]
        %v329 = vld [vmem:[%s243 + $0x1c] sm:$0xf]
        %v330 = vld [vmem:[%s243 + $0x20] sm:$0xf]
        %v331 = vld [vmem:[%s243 + $0x24] sm:$0xf]
        %v332 = vld [vmem:[%s243 + $0x28] sm:$0xf]
        %v333 = vld [vmem:[%s243 + $0x2c] sm:$0xf]
        %v334 = vld [vmem:[%s243 + $0x30] sm:$0xf]
        %v335 = vld [vmem:[%s243 + $0x34] sm:$0xf]
        %v336 = vld [vmem:[%s243 + $0x38] sm:$0xf]
        %v337 = vld [vmem:[%s243 + $0x3c] sm:$0xf]
        %v340 = vunpack.c.l.b16 %v320
        %v341 = vunpack.c.l.b16 %v321
        %v342 = vpack.c.b16 %v341, %v340
        %v360 = vunpack.c.l.b16 %v322
        %v361 = vunpack.c.l.b16 %v323
        %v362 = vunpack.c.l.b16 %v324
        %v363 = vunpack.c.l.b16 %v325
        %v364 = vunpack.c.l.b16 %v326
        %v365 = vunpack.c.l.b16 %v327
        %v366 = vunpack.c.l.b16 %v328
        %v367 = vunpack.c.l.b16 %v329
        %v368 = vunpack.c.l.b16 %v330
        %v369 = vunpack.c.l.b16 %v331
        %v370 = vunpack.c.l.b16 %v332
        %v371 = vunpack.c.l.b16 %v333
        %v372 = vunpack.c.l.b16 %v334
        %v373 = vunpack.c.l.b16 %v335
        %v374 = vunpack.c.l.b16 %v336
        %v375 = vunpack.c.l.b16 %v337
        %v376 = vpack.c.b16 %v361, %v360
        %v377 = vpack.c.b16 %v363, %v362
        %v378 = vpack.c.b16 %v365, %v364
        %v379 = vpack.c.b16 %v367, %v366
        %v380 = vpack.c.b16 %v369, %v368
        %v381 = vpack.c.b16 %v371, %v370
        %v382 = vpack.c.b16 %v373, %v372
        %v383 = vpack.c.b16 %v375, %v374
        %392 = vmatprep.subr.bf16.mxu0 0
        %393 = vmatpush1.bf16.msra.mxu0 %v383
        %394 = vmatprep.subr.bf16.mxu0 0
        %395 = vmatpush1.bf16.msra.mxu0 %v382
        %396 = vmatprep.subr.bf16.mxu0 0
        %397 = vmatpush1.bf16.msra.mxu0 %v381
        %398 = vmatprep.subr.bf16.mxu0 0
        %399 = vmatpush1.bf16.msra.mxu0 %v380
        %400 = vmatprep.subr.bf16.mxu0 0
        %401 = vmatpush1.bf16.msra.mxu0 %v379
        %402 = vmatprep.subr.bf16.mxu0 0
        %403 = vmatpush1.bf16.msra.mxu0 %v378
        %404 = vmatprep.subr.bf16.mxu0 0
        %405 = vmatpush1.bf16.msra.mxu0 %v377
        %406 = vmatprep.subr.bf16.mxu0 0
        %407 = vmatpush1.bf16.msra.mxu0 %v376
        %408 = vmatprep.subr.bf16.mxu0 0
        %409 = vmatpush2.bf16.msra.mxu0 0
        %410 = vmatprep.subr.bf16.mxu0 0
        %411 = vmatpush2.bf16.msra.mxu0 0
        %412 = vmatprep.subr.bf16.mxu0 0
        %413 = vmatpush2.bf16.msra.mxu0 0
        %414 = vmatprep.subr.bf16.mxu0 0
        %415 = vmatpush2.bf16.msra.mxu0 0
        %416 = vmatprep.subr.bf16.mxu0 0
        %417 = vmatpush2.bf16.msra.mxu0 0
        %418 = vmatprep.subr.bf16.mxu0 0
        %419 = vmatpush2.bf16.msra.mxu0 0
        %420 = vmatprep.subr.bf16.mxu0 0
        %421 = vmatpush2.bf16.msra.mxu0 0
        %422 = vmatprep.subr.bf16.mxu0 0
        %423 = vmatpush2.bf16.msra.mxu0 0
        %424 = vmatprep.mubr.bf16.mxu0 0
        %425 = vmatmul.mubr.bf16.gmra.mxu0 %v342
        %v426 = vpop.f32.mrf.mxu0
        %v427 = vadd.f32 0.0, %v426
        %v428 = vpop.f32.mrf.mxu0
        %v429 = vpop.f32.mrf.mxu0
        %v430 = vadd.f32 0.0, %v429
        %v431 = vpop.f32.mrf.mxu0
        %432 = vdwg.mxu0
        %v433 = vld [vmem:[%s2] sm:$0xff]
        %v434 = vld [vmem:[%s2 + $0x8] sm:$0xff]
        %v435 = vld [vmem:[%s3] sm:$0xff]
        %v436 = vld [vmem:[%s3 + $0x8] sm:$0xff]
        %439 = vrot.lane.b32.xlu0 %v433, 64
        %v440 = vpop.permute.xlu0 %439
        %441 = vrot.lane.b32.xlu0 %v434, 64
        %v442 = vpop.permute.xlu0 %441
        %v445 = vmul.f32 %v427, %v440
        %v446 = vmul.f32 %v430, %v442
        %449 = vrot.lane.b32.xlu0 %v435, 80
        %v450 = vpop.permute.xlu0 %449
        %451 = vrot.lane.b32.xlu0 %v436, 80
        %v452 = vpop.permute.xlu0 %451
        %v455 = vmul.f32 %v427, %v450
        %v456 = vmul.f32 %v430, %v452
        %459 = vrot.lane.b32.xlu0 %v455, 112
        %v460 = vpop.permute.xlu0 %459
        %461 = vrot.lane.b32.xlu0 %v456, 112
        %v462 = vpop.permute.xlu0 %461
        %v465 = vsub.f32 %v445, %v460
        %v466 = vsub.f32 %v446, %v462
        %467 = vrot.lane.b32.xlu0 %v435, 64
        %v468 = vpop.permute.xlu0 %467
        %469 = vrot.lane.b32.xlu0 %v436, 64
        %v470 = vpop.permute.xlu0 %469
        %v473 = vmul.f32 %v427, %v468
        %v474 = vmul.f32 %v430, %v470
        %475 = vrot.lane.b32.xlu0 %v433, 80
        %v476 = vpop.permute.xlu0 %475
        %477 = vrot.lane.b32.xlu0 %v434, 80
        %v478 = vpop.permute.xlu0 %477
        %v481 = vmul.f32 %v427, %v476
        %v482 = vmul.f32 %v430, %v478
        %485 = vrot.lane.b32.xlu0 %v481, 112
        %v486 = vpop.permute.xlu0 %485
        %487 = vrot.lane.b32.xlu0 %v482, 112
        %v488 = vpop.permute.xlu0 %487
        %v491 = vadd.f32 %v473, %v486
        %v492 = vadd.f32 %v474, %v488
        %v493 = vmul.f32 %v465, %v465
        %v494 = vmul.f32 %v466, %v466
        %497 = vrot.lane.b32.xlu0 %v493, 64
        %v498 = vpop.permute.xlu0 %497
        %499 = vrot.lane.b32.xlu0 %v494, 64
        %v500 = vpop.permute.xlu0 %499
        %vm503 = vcmask 130048
        %v504 = vsel %vm503, %v498, 0.0
        %505 = vadd.xlane.f32.xlu0 %v504
        %v506 = vpop.xlane.xlu0 %505
        %v507 = vsel %vm503, %v500, 0.0
        %508 = vadd.xlane.f32.xlu0 %v507
        %v509 = vpop.xlane.xlu0 %508
        %v510 = vmul.f32 %v491, %v491
        %v511 = vmul.f32 %v492, %v492
        %514 = vrot.lane.b32.xlu0 %v510, 64
        %v515 = vpop.permute.xlu0 %514
        %516 = vrot.lane.b32.xlu0 %v511, 64
        %v517 = vpop.permute.xlu0 %516
        %v520 = vsel %vm503, %v515, 0.0
        %521 = vadd.xlane.f32.xlu0 %v520
        %v522 = vpop.xlane.xlu0 %521
        %v523 = vsel %vm503, %v517, 0.0
        %524 = vadd.xlane.f32.xlu0 %v523
        %v525 = vpop.xlane.xlu0 %524
        %v526 = vadd.f32 %v506, %v522
        %v527 = vadd.f32 %v509, %v525
        %v528 = vrcp.pop 32.0
        %v529 = vmul.f32 %v526, %v528
        %v530 = vmul.f32 %v527, %v528
        %v531 = vadd.f32 %v529, 1e-05
        %v532 = vadd.f32 %v530, 1e-05
        %v533 = vrsqrt.pop %v531
        %v534 = vrsqrt.pop %v532
        %v535 = vmul.f32 %v465, %v533
        %v536 = vmul.f32 %v466, %v534
        %v537 = vmul.f32 %v491, %v533
        %v538 = vmul.f32 %v492, %v534
        %v539 = vpack.c.bf16 %v536, %v535
        %v540 = vpack.c.bf16 %v538, %v537
        %v541 = vpack.c.bf16 %v430, %v427
        %v542 = vlaneseq
        %v543 = vshrl.u32 %v542, 7
        %v544 = vadd.s32 %v543, 8
        %v545 = vlaneseq
        %v546 = vand.u32 %v545, 127
        %vm547 = vcmp.ge.s32.totalorder %v543, %v546
        %vm548 = vcmp.ge.s32.totalorder %v544, %v546
        %v549 = vsel %vm547, 0.0, -1e+30
        %v550 = vsel %vm548, 0.0, -1e+30
        %v551 = vmul.f32 %v427, %v433
        %v552 = vmul.f32 %v430, %v434
        %553 = vrot.lane.b32.xlu0 %v435, 16
        %v554 = vpop.permute.xlu0 %553
        %555 = vrot.lane.b32.xlu0 %v436, 16
        %v556 = vpop.permute.xlu0 %555
        %v559 = vmul.f32 %v427, %v554
        %v560 = vmul.f32 %v430, %v556
        %563 = vrot.lane.b32.xlu0 %v559, 112
        %v564 = vpop.permute.xlu0 %563
        %565 = vrot.lane.b32.xlu0 %v560, 112
        %v566 = vpop.permute.xlu0 %565
        %v569 = vsub.f32 %v551, %v564
        %v570 = vsub.f32 %v552, %v566
        %v571 = vmul.f32 %v427, %v435
        %v572 = vmul.f32 %v430, %v436
        %573 = vrot.lane.b32.xlu0 %v433, 16
        %v574 = vpop.permute.xlu0 %573
        %575 = vrot.lane.b32.xlu0 %v434, 16
        %v576 = vpop.permute.xlu0 %575
        %v579 = vmul.f32 %v427, %v574
        %v580 = vmul.f32 %v430, %v576
        %583 = vrot.lane.b32.xlu0 %v579, 112
        %v584 = vpop.permute.xlu0 %583
        %585 = vrot.lane.b32.xlu0 %v580, 112
        %v586 = vpop.permute.xlu0 %585
        %v589 = vadd.f32 %v571, %v584
        %v590 = vadd.f32 %v572, %v586
        %v591 = vmul.f32 %v569, %v569
        %v592 = vmul.f32 %v570, %v570
        %v593 = vsel %vm503, %v591, 0.0
        %594 = vadd.xlane.f32.xlu0 %v593
        %v595 = vpop.xlane.xlu0 %594
        %v596 = vsel %vm503, %v592, 0.0
        %597 = vadd.xlane.f32.xlu0 %v596
        %v598 = vpop.xlane.xlu0 %597
        %v599 = vmul.f32 %v589, %v589
        %v600 = vmul.f32 %v590, %v590
        %v601 = vsel %vm503, %v599, 0.0
        %602 = vadd.xlane.f32.xlu0 %v601
        %v603 = vpop.xlane.xlu0 %602
        %v604 = vsel %vm503, %v600, 0.0
        %605 = vadd.xlane.f32.xlu0 %v604
        %v606 = vpop.xlane.xlu0 %605
        %v607 = vadd.f32 %v595, %v603
        %v608 = vadd.f32 %v598, %v606
        %v609 = vmul.f32 %v607, %v528
        %v610 = vmul.f32 %v608, %v528
        %v611 = vadd.f32 %v609, 1e-05
        %v612 = vadd.f32 %v610, 1e-05
        %v613 = vrsqrt.pop %v611
        %v614 = vrsqrt.pop %v612
        %v615 = vmul.f32 %v569, %v613
        %v616 = vmul.f32 %v570, %v614
        %v617 = vmul.f32 %v589, %v613
        %v618 = vmul.f32 %v590, %v614
        %v619 = vmul.f32 %v615, 0.17677669
        %v620 = vmul.f32 %v616, 0.17677669
        %v621 = vpack.c.bf16 %v620, %v619
        %v622 = vmul.f32 %v617, 0.17677669
        %v623 = vmul.f32 %v618, 0.17677669
        %v624 = vpack.c.bf16 %v623, %v622
        %626 = vrot.lane.b32.xlu0 %v540, 64
        %v627 = vpop.permute.xlu0 %626
        %v629 = vsel %vm503, %v624, 0
        %v632 = vsel %vm503, %v627, 0
        %634 = vmatprep.subr.bf16.mxu0 0
        %635 = vmatpush1.bf16.xpose.msra.mxu0 0
        %636 = vmatprep.subr.bf16.mxu0 0
        %637 = vmatpush1.bf16.xpose.msra.mxu0 0
        %638 = vmatprep.subr.bf16.mxu0 0
        %639 = vmatpush1.bf16.xpose.msra.mxu0 0
        %640 = vmatprep.subr.bf16.mxu0 0
        %641 = vmatpush1.bf16.xpose.msra.mxu0 0
        %642 = vmatprep.subr.bf16.mxu0 0
        %643 = vmatpush1.bf16.xpose.msra.mxu0 0
        %644 = vmatprep.subr.bf16.mxu0 0
        %645 = vmatpush1.bf16.xpose.msra.mxu0 0
        %646 = vmatprep.subr.bf16.mxu0 0
        %647 = vmatpush1.bf16.xpose.msra.mxu0 0
        %648 = vmatprep.subr.bf16.mxu0 0
        %649 = vmatpush1.bf16.xpose.msra.mxu0 %v632
        %650 = vmatprep.subr.bf16.mxu0 0
        %651 = vmatpush2.bf16.xpose.msra.mxu0 0
        %652 = vmatprep.subr.bf16.mxu0 0
        %653 = vmatpush2.bf16.xpose.msra.mxu0 0
        %654 = vmatprep.subr.bf16.mxu0 0
        %655 = vmatpush2.bf16.xpose.msra.mxu0 0
        %656 = vmatprep.subr.bf16.mxu0 0
        %657 = vmatpush2.bf16.xpose.msra.mxu0 0
        %658 = vmatprep.subr.bf16.mxu0 0
        %659 = vmatpush2.bf16.xpose.msra.mxu0 0
        %660 = vmatprep.subr.bf16.mxu0 0
        %661 = vmatpush2.bf16.xpose.msra.mxu0 0
        %662 = vmatprep.subr.bf16.mxu0 0
        %663 = vmatpush2.bf16.xpose.msra.mxu0 0
        %664 = vmatprep.subr.bf16.mxu0 0
        %665 = vmatpush2.bf16.xpose.msra.mxu0 0
        %666 = vmatprep.mubr.bf16.mxu0 0
        %667 = vmatmul.mubr.bf16.gmra.mxu0 %v629
        %v668 = vpop.f32.mrf.mxu0
        %v669 = vadd.f32 0.0, %v668
        %v670 = vpop.f32.mrf.mxu0
        %v671 = vpop.f32.mrf.mxu0
        %v672 = vadd.f32 0.0, %v671
        %v673 = vpop.f32.mrf.mxu0
        %674 = vdwg.mxu0
        %676 = vrot.lane.b32.xlu0 %v539, 64
        %v677 = vpop.permute.xlu0 %676
        %v679 = vsel %vm503, %v621, 0
        %v682 = vsel %vm503, %v677, 0
        %684 = vmatprep.subr.bf16.mxu0 0
        %685 = vmatpush1.bf16.xpose.msra.mxu0 0
        %686 = vmatprep.subr.bf16.mxu0 0
        %687 = vmatpush1.bf16.xpose.msra.mxu0 0
        %688 = vmatprep.subr.bf16.mxu0 0
        %689 = vmatpush1.bf16.xpose.msra.mxu0 0
        %690 = vmatprep.subr.bf16.mxu0 0
        %691 = vmatpush1.bf16.xpose.msra.mxu0 0
        %692 = vmatprep.subr.bf16.mxu0 0
        %693 = vmatpush1.bf16.xpose.msra.mxu0 0
        %694 = vmatprep.subr.bf16.mxu0 0
        %695 = vmatpush1.bf16.xpose.msra.mxu0 0
        %696 = vmatprep.subr.bf16.mxu0 0
        %697 = vmatpush1.bf16.xpose.msra.mxu0 0
        %698 = vmatprep.subr.bf16.mxu0 0
        %699 = vmatpush1.bf16.xpose.msra.mxu0 %v682
        %700 = vmatprep.subr.bf16.mxu0 0
        %701 = vmatpush2.bf16.xpose.msra.mxu0 0
        %702 = vmatprep.subr.bf16.mxu0 0
        %703 = vmatpush2.bf16.xpose.msra.mxu0 0
        %704 = vmatprep.subr.bf16.mxu0 0
        %705 = vmatpush2.bf16.xpose.msra.mxu0 0
        %706 = vmatprep.subr.bf16.mxu0 0
        %707 = vmatpush2.bf16.xpose.msra.mxu0 0
        %708 = vmatprep.subr.bf16.mxu0 0
        %709 = vmatpush2.bf16.xpose.msra.mxu0 0
        %710 = vmatprep.subr.bf16.mxu0 0
        %711 = vmatpush2.bf16.xpose.msra.mxu0 0
        %712 = vmatprep.subr.bf16.mxu0 0
        %713 = vmatpush2.bf16.xpose.msra.mxu0 0
        %714 = vmatprep.subr.bf16.mxu0 0
        %715 = vmatpush2.bf16.xpose.msra.mxu0 0
        %716 = vmatprep.mubr.bf16.mxu0 0
        %717 = vmatmul.mubr.bf16.gmra.mxu0 %v679
        %v718 = vpop.f32.mrf.mxu0
        %v719 = vadd.f32 %v669, %v718
        %v720 = vpop.f32.mrf.mxu0
        %v721 = vpop.f32.mrf.mxu0
        %v722 = vadd.f32 %v672, %v721
        %v723 = vpop.f32.mrf.mxu0
        %724 = vdwg.mxu0
        %v725 = vadd.f32 %v719, %v549
        %v726 = vadd.f32 %v722, %v550
        %v727 = vsel %vm503, %v725, -inf
        %728 = vmax.xlane.f32.xlu0 %v727
        %v729 = vpop.xlane.xlu0 %728
        %v730 = vsel %vm503, %v726, -inf
        %731 = vmax.xlane.f32.xlu0 %v730
        %v732 = vpop.xlane.xlu0 %731
        %v733 = vsub.f32 %v725, %v729
        %v734 = vsub.f32 %v726, %v732
        %v735 = vmul.f32 %v733, 1.442695
        %v736 = vpow.pop %v735
        %v737 = vmul.f32 %v734, 1.442695
        %v738 = vpow.pop %v737
        %v739 = vsel %vm503, %v736, 0.0
        %740 = vadd.xlane.f32.xlu0 %v739
        %v741 = vpop.xlane.xlu0 %740
        %v742 = vsel %vm503, %v738, 0.0
        %743 = vadd.xlane.f32.xlu0 %v742
        %v744 = vpop.xlane.xlu0 %743
        %v745 = vpack.c.bf16 %v738, %v736
        %747 = vrot.lane.b32.xlu0 %v541, 32
        %v748 = vpop.permute.xlu0 %747
        %v751 = vsel %vm503, %v745, 0
        %753 = vmatprep.subr.bf16.mxu0 0
        %754 = vmatpush1.bf16.msra.mxu0 0
        %755 = vmatprep.subr.bf16.mxu0 0
        %756 = vmatpush1.bf16.msra.mxu0 0
        %757 = vmatprep.subr.bf16.mxu0 0
        %758 = vmatpush1.bf16.msra.mxu0 0
        %759 = vmatprep.subr.bf16.mxu0 0
        %760 = vmatpush1.bf16.msra.mxu0 0
        %761 = vmatprep.subr.bf16.mxu0 0
        %762 = vmatpush1.bf16.msra.mxu0 0
        %763 = vmatprep.subr.bf16.mxu0 0
        %764 = vmatpush1.bf16.msra.mxu0 0
        %765 = vmatprep.subr.bf16.mxu0 0
        %766 = vmatpush1.bf16.msra.mxu0 0
        %767 = vmatprep.subr.bf16.mxu0 0
        %768 = vmatpush1.bf16.msra.mxu0 %v748
        %769 = vmatprep.subr.bf16.mxu0 0
        %770 = vmatpush2.bf16.msra.mxu0 0
        %771 = vmatprep.subr.bf16.mxu0 0
        %772 = vmatpush2.bf16.msra.mxu0 0
        %773 = vmatprep.subr.bf16.mxu0 0
        %774 = vmatpush2.bf16.msra.mxu0 0
        %775 = vmatprep.subr.bf16.mxu0 0
        %776 = vmatpush2.bf16.msra.mxu0 0
        %777 = vmatprep.subr.bf16.mxu0 0
        %778 = vmatpush2.bf16.msra.mxu0 0
        %779 = vmatprep.subr.bf16.mxu0 0
        %780 = vmatpush2.bf16.msra.mxu0 0
        %781 = vmatprep.subr.bf16.mxu0 0
        %782 = vmatpush2.bf16.msra.mxu0 0
        %783 = vmatprep.subr.bf16.mxu0 0
        %784 = vmatpush2.bf16.msra.mxu0 0
        %785 = vmatprep.mubr.bf16.mxu0 0
        %786 = vmatmul.mubr.bf16.gmra.mxu0 %v751
        %v787 = vpop.f32.mrf.mxu0
        %v788 = vadd.f32 0.0, %v787
        %v789 = vpop.f32.mrf.mxu0
        %v790 = vpop.f32.mrf.mxu0
        %v791 = vadd.f32 0.0, %v790
        %v792 = vpop.f32.mrf.mxu0
        %793 = vdwg.mxu0
        %v794 = vrcp.pop %v741
        %v795 = vrcp.pop %v744
        %v796 = vmul.f32 %v788, %v794
        %v797 = vmul.f32 %v791, %v795
        %798 = vrot.lane.b32.xlu0 %v433, 32
        %v799 = vpop.permute.xlu0 %798
        %800 = vrot.lane.b32.xlu0 %v434, 32
        %v801 = vpop.permute.xlu0 %800
        %v804 = vmul.f32 %v427, %v799
        %v805 = vmul.f32 %v430, %v801
        %806 = vrot.lane.b32.xlu0 %v435, 48
        %v807 = vpop.permute.xlu0 %806
        %808 = vrot.lane.b32.xlu0 %v436, 48
        %v809 = vpop.permute.xlu0 %808
        %v812 = vmul.f32 %v427, %v807
        %v813 = vmul.f32 %v430, %v809
        %816 = vrot.lane.b32.xlu0 %v812, 112
        %v817 = vpop.permute.xlu0 %816
        %818 = vrot.lane.b32.xlu0 %v813, 112
        %v819 = vpop.permute.xlu0 %818
        %v822 = vsub.f32 %v804, %v817
        %v823 = vsub.f32 %v805, %v819
        %824 = vrot.lane.b32.xlu0 %v435, 32
        %v825 = vpop.permute.xlu0 %824
        %826 = vrot.lane.b32.xlu0 %v436, 32
        %v827 = vpop.permute.xlu0 %826
        %v830 = vmul.f32 %v427, %v825
        %v831 = vmul.f32 %v430, %v827
        %832 = vrot.lane.b32.xlu0 %v433, 48
        %v833 = vpop.permute.xlu0 %832
        %834 = vrot.lane.b32.xlu0 %v434, 48
        %v835 = vpop.permute.xlu0 %834
        %v838 = vmul.f32 %v427, %v833
        %v839 = vmul.f32 %v430, %v835
        %842 = vrot.lane.b32.xlu0 %v838, 112
        %v843 = vpop.permute.xlu0 %842
        %844 = vrot.lane.b32.xlu0 %v839, 112
        %v845 = vpop.permute.xlu0 %844
        %v848 = vadd.f32 %v830, %v843
        %v849 = vadd.f32 %v831, %v845
        %v850 = vmul.f32 %v822, %v822
        %v851 = vmul.f32 %v823, %v823
        %854 = vrot.lane.b32.xlu0 %v850, 96
        %v855 = vpop.permute.xlu0 %854
        %856 = vrot.lane.b32.xlu0 %v851, 96
        %v857 = vpop.permute.xlu0 %856
        %v860 = vsel %vm503, %v855, 0.0
        %861 = vadd.xlane.f32.xlu0 %v860
        %v862 = vpop.xlane.xlu0 %861
        %v863 = vsel %vm503, %v857, 0.0
        %864 = vadd.xlane.f32.xlu0 %v863
        %v865 = vpop.xlane.xlu0 %864
        %v866 = vmul.f32 %v848, %v848
        %v867 = vmul.f32 %v849, %v849
        %870 = vrot.lane.b32.xlu0 %v866, 96
        %v871 = vpop.permute.xlu0 %870
        %872 = vrot.lane.b32.xlu0 %v867, 96
        %v873 = vpop.permute.xlu0 %872
        %v876 = vsel %vm503, %v871, 0.0
        %877 = vadd.xlane.f32.xlu0 %v876
        %v878 = vpop.xlane.xlu0 %877
        %v879 = vsel %vm503, %v873, 0.0
        %880 = vadd.xlane.f32.xlu0 %v879
        %v881 = vpop.xlane.xlu0 %880
        %v882 = vadd.f32 %v862, %v878
        %v883 = vadd.f32 %v865, %v881
        %v884 = vmul.f32 %v882, %v528
        %v885 = vmul.f32 %v883, %v528
        %v886 = vadd.f32 %v884, 1e-05
        %v887 = vadd.f32 %v885, 1e-05
        %v888 = vrsqrt.pop %v886
        %v889 = vrsqrt.pop %v887
        %v890 = vmul.f32 %v822, %v888
        %v891 = vmul.f32 %v823, %v889
        %v892 = vmul.f32 %v848, %v888
        %v893 = vmul.f32 %v849, %v889
        %v894 = vmul.f32 %v890, 0.17677669
        %v895 = vmul.f32 %v891, 0.17677669
        %v896 = vpack.c.bf16 %v895, %v894
        %v897 = vmul.f32 %v892, 0.17677669
        %v898 = vmul.f32 %v893, 0.17677669
        %v899 = vpack.c.bf16 %v898, %v897
        %901 = vrot.lane.b32.xlu0 %v899, 96
        %v902 = vpop.permute.xlu0 %901
        %v904 = vsel %vm503, %v902, 0
        %906 = vmatprep.subr.bf16.mxu0 0
        %907 = vmatpush1.bf16.xpose.msra.mxu0 0
        %908 = vmatprep.subr.bf16.mxu0 0
        %909 = vmatpush1.bf16.xpose.msra.mxu0 0
        %910 = vmatprep.subr.bf16.mxu0 0
        %911 = vmatpush1.bf16.xpose.msra.mxu0 0
        %912 = vmatprep.subr.bf16.mxu0 0
        %913 = vmatpush1.bf16.xpose.msra.mxu0 0
        %914 = vmatprep.subr.bf16.mxu0 0
        %915 = vmatpush1.bf16.xpose.msra.mxu0 0
        %916 = vmatprep.subr.bf16.mxu0 0
        %917 = vmatpush1.bf16.xpose.msra.mxu0 0
        %918 = vmatprep.subr.bf16.mxu0 0
        %919 = vmatpush1.bf16.xpose.msra.mxu0 0
        %920 = vmatprep.subr.bf16.mxu0 0
        %921 = vmatpush1.bf16.xpose.msra.mxu0 %v632
        %922 = vmatprep.subr.bf16.mxu0 0
        %923 = vmatpush2.bf16.xpose.msra.mxu0 0
        %924 = vmatprep.subr.bf16.mxu0 0
        %925 = vmatpush2.bf16.xpose.msra.mxu0 0
        %926 = vmatprep.subr.bf16.mxu0 0
        %927 = vmatpush2.bf16.xpose.msra.mxu0 0
        %928 = vmatprep.subr.bf16.mxu0 0
        %929 = vmatpush2.bf16.xpose.msra.mxu0 0
        %930 = vmatprep.subr.bf16.mxu0 0
        %931 = vmatpush2.bf16.xpose.msra.mxu0 0
        %932 = vmatprep.subr.bf16.mxu0 0
        %933 = vmatpush2.bf16.xpose.msra.mxu0 0
        %934 = vmatprep.subr.bf16.mxu0 0
        %935 = vmatpush2.bf16.xpose.msra.mxu0 0
        %936 = vmatprep.subr.bf16.mxu0 0
        %937 = vmatpush2.bf16.xpose.msra.mxu0 0
        %938 = vmatprep.mubr.bf16.mxu0 0
        %939 = vmatmul.mubr.bf16.gmra.mxu0 %v904
        %v940 = vpop.f32.mrf.mxu0
        %v941 = vadd.f32 0.0, %v940
        %v942 = vpop.f32.mrf.mxu0
        %v943 = vpop.f32.mrf.mxu0
        %v944 = vadd.f32 0.0, %v943
        %v945 = vpop.f32.mrf.mxu0
        %946 = vdwg.mxu0
        %948 = vrot.lane.b32.xlu0 %v896, 96
        %v949 = vpop.permute.xlu0 %948
        %v951 = vsel %vm503, %v949, 0
        %953 = vmatprep.subr.bf16.mxu0 0
        %954 = vmatpush1.bf16.xpose.msra.mxu0 0
        %955 = vmatprep.subr.bf16.mxu0 0
        %956 = vmatpush1.bf16.xpose.msra.mxu0 0
        %957 = vmatprep.subr.bf16.mxu0 0
        %958 = vmatpush1.bf16.xpose.msra.mxu0 0
        %959 = vmatprep.subr.bf16.mxu0 0
        %960 = vmatpush1.bf16.xpose.msra.mxu0 0
        %961 = vmatprep.subr.bf16.mxu0 0
        %962 = vmatpush1.bf16.xpose.msra.mxu0 0
        %963 = vmatprep.subr.bf16.mxu0 0
        %964 = vmatpush1.bf16.xpose.msra.mxu0 0
        %965 = vmatprep.subr.bf16.mxu0 0
        %966 = vmatpush1.bf16.xpose.msra.mxu0 0
        %967 = vmatprep.subr.bf16.mxu0 0
        %968 = vmatpush1.bf16.xpose.msra.mxu0 %v682
        %969 = vmatprep.subr.bf16.mxu0 0
        %970 = vmatpush2.bf16.xpose.msra.mxu0 0
        %971 = vmatprep.subr.bf16.mxu0 0
        %972 = vmatpush2.bf16.xpose.msra.mxu0 0
        %973 = vmatprep.subr.bf16.mxu0 0
        %974 = vmatpush2.bf16.xpose.msra.mxu0 0
        %975 = vmatprep.subr.bf16.mxu0 0
        %976 = vmatpush2.bf16.xpose.msra.mxu0 0
        %977 = vmatprep.subr.bf16.mxu0 0
        %978 = vmatpush2.bf16.xpose.msra.mxu0 0
        %979 = vmatprep.subr.bf16.mxu0 0
        %980 = vmatpush2.bf16.xpose.msra.mxu0 0
        %981 = vmatprep.subr.bf16.mxu0 0
        %982 = vmatpush2.bf16.xpose.msra.mxu0 0
        %983 = vmatprep.subr.bf16.mxu0 0
        %984 = vmatpush2.bf16.xpose.msra.mxu0 0
        %985 = vmatprep.mubr.bf16.mxu0 0
        %986 = vmatmul.mubr.bf16.gmra.mxu0 %v951
        %v987 = vpop.f32.mrf.mxu0
        %v988 = vadd.f32 %v941, %v987
        %v989 = vpop.f32.mrf.mxu0
        %v990 = vpop.f32.mrf.mxu0
        %v991 = vadd.f32 %v944, %v990
        %v992 = vpop.f32.mrf.mxu0
        %993 = vdwg.mxu0
        %v994 = vadd.f32 %v988, %v549
        %v995 = vadd.f32 %v991, %v550
        %v996 = vsel %vm503, %v994, -inf
        %997 = vmax.xlane.f32.xlu0 %v996
        %v998 = vpop.xlane.xlu0 %997
        %v999 = vsel %vm503, %v995, -inf
        %1000 = vmax.xlane.f32.xlu0 %v999
        %v1001 = vpop.xlane.xlu0 %1000
        %v1002 = vsub.f32 %v994, %v998
        %v1003 = vsub.f32 %v995, %v1001
        %v1004 = vmul.f32 %v1002, 1.442695
        %v1005 = vpow.pop %v1004
        %v1006 = vmul.f32 %v1003, 1.442695
        %v1007 = vpow.pop %v1006
        %v1008 = vsel %vm503, %v1005, 0.0
        %1009 = vadd.xlane.f32.xlu0 %v1008
        %v1010 = vpop.xlane.xlu0 %1009
        %v1011 = vsel %vm503, %v1007, 0.0
        %1012 = vadd.xlane.f32.xlu0 %v1011
        %v1013 = vpop.xlane.xlu0 %1012
        %v1014 = vpack.c.bf16 %v1007, %v1005
        %v1016 = vsel %vm503, %v1014, 0
        %1018 = vmatprep.subr.bf16.mxu0 0
        %1019 = vmatpush1.bf16.msra.mxu0 0
        %1020 = vmatprep.subr.bf16.mxu0 0
        %1021 = vmatpush1.bf16.msra.mxu0 0
        %1022 = vmatprep.subr.bf16.mxu0 0
        %1023 = vmatpush1.bf16.msra.mxu0 0
        %1024 = vmatprep.subr.bf16.mxu0 0
        %1025 = vmatpush1.bf16.msra.mxu0 0
        %1026 = vmatprep.subr.bf16.mxu0 0
        %1027 = vmatpush1.bf16.msra.mxu0 0
        %1028 = vmatprep.subr.bf16.mxu0 0
        %1029 = vmatpush1.bf16.msra.mxu0 0
        %1030 = vmatprep.subr.bf16.mxu0 0
        %1031 = vmatpush1.bf16.msra.mxu0 0
        %1032 = vmatprep.subr.bf16.mxu0 0
        %1033 = vmatpush1.bf16.msra.mxu0 %v748
        %1034 = vmatprep.subr.bf16.mxu0 0
        %1035 = vmatpush2.bf16.msra.mxu0 0
        %1036 = vmatprep.subr.bf16.mxu0 0
        %1037 = vmatpush2.bf16.msra.mxu0 0
        %1038 = vmatprep.subr.bf16.mxu0 0
        %1039 = vmatpush2.bf16.msra.mxu0 0
        %1040 = vmatprep.subr.bf16.mxu0 0
        %1041 = vmatpush2.bf16.msra.mxu0 0
        %1042 = vmatprep.subr.bf16.mxu0 0
        %1043 = vmatpush2.bf16.msra.mxu0 0
        %1044 = vmatprep.subr.bf16.mxu0 0
        %1045 = vmatpush2.bf16.msra.mxu0 0
        %1046 = vmatprep.subr.bf16.mxu0 0
        %1047 = vmatpush2.bf16.msra.mxu0 0
        %1048 = vmatprep.subr.bf16.mxu0 0
        %1049 = vmatpush2.bf16.msra.mxu0 0
        %1050 = vmatprep.mubr.bf16.mxu0 0
        %1051 = vmatmul.mubr.bf16.gmra.mxu0 %v1016
        %v1052 = vpop.f32.mrf.mxu0
        %v1053 = vadd.f32 0.0, %v1052
        %v1054 = vpop.f32.mrf.mxu0
        %v1055 = vpop.f32.mrf.mxu0
        %v1056 = vadd.f32 0.0, %v1055
        %v1057 = vpop.f32.mrf.mxu0
        %1058 = vdwg.mxu0
        %v1059 = vrcp.pop %v1010
        %v1060 = vrcp.pop %v1013
        %v1061 = vmul.f32 %v1053, %v1059
        %v1062 = vmul.f32 %v1056, %v1060
        %1065 = vrot.lane.b32.xlu0 %v1061, 32
        %v1066 = vpop.permute.xlu0 %1065
        %1067 = vrot.lane.b32.xlu0 %v1062, 32
        %v1068 = vpop.permute.xlu0 %1067
        %vm1071 = vcmask 261120
        %v1072 = vsel %vm1071, %v796, %v1066
        %v1073 = vsel %vm1071, %v797, %v1068
        %v1074 = vpack.c.bf16 %v1073, %v1072
        %v1075 = vld [vmem:[#allocation3] sm:$0xff]
        %v1076 = vld [vmem:[#allocation3 + $0x8] sm:$0xff]
        %v1077 = vld [vmem:[%s276] sm:$0xf]
        %v1078 = vld [vmem:[%s276 + $0x4] sm:$0xf]
        %v1079 = vld [vmem:[%s276 + $0x8] sm:$0xf]
        %v1080 = vld [vmem:[%s276 + $0xc] sm:$0xf]
        %v1081 = vld [vmem:[%s276 + $0x10] sm:$0xf]
        %v1082 = vld [vmem:[%s276 + $0x14] sm:$0xf]
        %v1083 = vld [vmem:[%s276 + $0x18] sm:$0xf]
        %v1084 = vld [vmem:[%s276 + $0x1c] sm:$0xf]
        %v1093 = vunpack.c.l.b16 %v1077
        %v1094 = vunpack.c.l.b16 %v1078
        %v1095 = vunpack.c.l.b16 %v1079
        %v1096 = vunpack.c.l.b16 %v1080
        %v1097 = vunpack.c.l.b16 %v1081
        %v1098 = vunpack.c.l.b16 %v1082
        %v1099 = vunpack.c.l.b16 %v1083
        %v1100 = vunpack.c.l.b16 %v1084
        %v1101 = vpack.c.b16 %v1094, %v1093
        %v1102 = vpack.c.b16 %v1096, %v1095
        %v1103 = vpack.c.b16 %v1098, %v1097
        %v1104 = vpack.c.b16 %v1100, %v1099
        %vm1109 = vcmask 523264
        %v1111 = vsel %vm1109, %v1074, 0
        %1113 = vmatprep.subr.bf16.mxu0 0
        %1114 = vmatpush1.bf16.msra.mxu0 0
        %1115 = vmatprep.subr.bf16.mxu0 0
        %1116 = vmatpush1.bf16.msra.mxu0 0
        %1117 = vmatprep.subr.bf16.mxu0 0
        %1118 = vmatpush1.bf16.msra.mxu0 0
        %1119 = vmatprep.subr.bf16.mxu0 0
        %1120 = vmatpush1.bf16.msra.mxu0 0
        %1121 = vmatprep.subr.bf16.mxu0 0
        %1122 = vmatpush1.bf16.msra.mxu0 %v1104
        %1123 = vmatprep.subr.bf16.mxu0 0
        %1124 = vmatpush1.bf16.msra.mxu0 %v1103
        %1125 = vmatprep.subr.bf16.mxu0 0
        %1126 = vmatpush1.bf16.msra.mxu0 %v1102
        %1127 = vmatprep.subr.bf16.mxu0 0
        %1128 = vmatpush1.bf16.msra.mxu0 %v1101
        %1129 = vmatprep.subr.bf16.mxu0 0
        %1130 = vmatpush2.bf16.msra.mxu0 0
        %1131 = vmatprep.subr.bf16.mxu0 0
        %1132 = vmatpush2.bf16.msra.mxu0 0
        %1133 = vmatprep.subr.bf16.mxu0 0
        %1134 = vmatpush2.bf16.msra.mxu0 0
        %1135 = vmatprep.subr.bf16.mxu0 0
        %1136 = vmatpush2.bf16.msra.mxu0 0
        %1137 = vmatprep.subr.bf16.mxu0 0
        %1138 = vmatpush2.bf16.msra.mxu0 0
        %1139 = vmatprep.subr.bf16.mxu0 0
        %1140 = vmatpush2.bf16.msra.mxu0 0
        %1141 = vmatprep.subr.bf16.mxu0 0
        %1142 = vmatpush2.bf16.msra.mxu0 0
        %1143 = vmatprep.subr.bf16.mxu0 0
        %1144 = vmatpush2.bf16.msra.mxu0 0
        %1145 = vmatprep.mubr.bf16.mxu0 0
        %1146 = vmatmul.mubr.bf16.gmra.mxu0 %v1111
        %v1147 = vpop.f32.mrf.mxu0
        %v1148 = vadd.f32 0.0, %v1147
        %v1149 = vpop.f32.mrf.mxu0
        %v1150 = vpop.f32.mrf.mxu0
        %v1151 = vadd.f32 0.0, %v1150
        %v1152 = vpop.f32.mrf.mxu0
        %1153 = vdwg.mxu0
        %v1154 = vadd.f32 %v1075, %v1148
        %v1155 = vadd.f32 %v1076, %v1151
        %1156 = vst [vmem:[#allocation3] sm:$0xff] %v1154
        %1157 = vst [vmem:[#allocation3 + $0x8] sm:$0xff] %v1155
        %p1158 = scmp.eq.s32.totalorder %s20, 1
        // Predicated region
        $region53: #{_forward.3} parent=43 // pred_check
          %p1159 = pneg %p1158
        $region54: #{_forward.3} parent=43 // pred_check_branch
          %1161 = sbr.rel (%p1159) target = $region56
        $region55: #{_forward.3} parent=43 // pred_region
          %v1162 = vld [vmem:[#allocation3] sm:$0xff]
          %v1163 = vld [vmem:[#allocation3 + $0x8] sm:$0xff]
          %1164 = vst [vmem:[%s6] sm:$0xff] %v1162
          %1165 = vst [vmem:[%s6 + $0x8] sm:$0xff] %v1163
        $region56: #{_forward.3} parent=43 // pred_fallthru
          _
        // Predicated region
        $region57: #{_forward.3} parent=43 // pred_check
          %p1166 = pneg %p169
        $region58: #{_forward.3} parent=43 // pred_check_branch
          %1168 = sbr.rel (%p1166) target = $region60
        $region59: #{_forward.3} parent=43 // pred_region
          _
        $region60: #{_forward.3} parent=43 // pred_fallthru
          _
        // Predicated region
        $region61: #{_forward.3} parent=43 // pred_check
          %p1169 = pneg %p169
        $region62: #{_forward.3} parent=43 // pred_check_branch
          %1171 = sbr.rel (%p1169) target = $region64
        $region63: #{_forward.3} parent=43 // pred_region
          _
        $region64: #{_forward.3} parent=43 // pred_fallthru
          _
      $region44: #{_forward.3} parent=5 // pred_fallthru
        _
      %p1172 = scmp.le.s32.totalorder 2, %s15
      // Predicated region
      $region65: #{_forward.3} parent=5 // pred_check
        %p1173 = pneg %p1172
      $region66: #{_forward.3} parent=5 // pred_check_branch
        %1175 = sbr.rel (%p1173) target = $region68
      $region67: #{_forward.3} parent=5 // pred_region
        %s1176 = ssub.s32 %s15, 2
      $region68: #{_forward.3} parent=5 // pred_fallthru
        _
    $region6: #{_forward.3} parent=1 // loop_footer
      %s19 = sadd.s32 1, %s15
    $region7: #{_forward.3} parent=1 // loop_footer_branch
      %14 = sbr.rel target = $region3
    $region8: #{_forward.3} parent=1 // loop_exit
      _
    %1177 = vsyncpa [#allocation5], 1
    %s1178 = scalar_lea.sflag [#allocation5], 1
    %1179 = vsyncpa %s1178, 1

</llo_original>
